<compile_context>
chip_gen: v7x
topology: tpu7x:2x2x1
jax: 0.10.0
libtpu: 0.0.40
codegen_flags: <defaults>
</compile_context>

<pallas_src>
import jax
import jax.numpy as jnp
from jax.experimental import pallas as pl
from jax.experimental.pallas import tpu as pltpu

D_IN, H, D_OUT = 1000, 500, 10
H_P, D_OUT_P = 512, 128          # lane-aligned padded hidden / output dims


def mlp_kernel(x_ref, w1_ref, b1_ref, w2_ref, b2_ref, o_ref):
    # fc1 on the MXU: bf16 x bf16 -> f32 accumulation (cast of x hidden under its DMA)
    x_bf = x_ref[...].astype(jnp.bfloat16)
    h = jnp.dot(x_bf, w1_ref[...], preferred_element_type=jnp.float32)
    h = jnp.maximum(h + b1_ref[...], 0.0)                     # bias + ReLU in f32 (VPU)
    # fc2 on the MXU: bf16 operands, f32 accumulation (single-pass MXU)
    y = jnp.dot(h.astype(jnp.bfloat16), w2_ref[...], preferred_element_type=jnp.float32)
    o_ref[...] = (y + b2_ref[...]).astype(o_ref.dtype)


def _round_up(x, m):
    return ((x + m - 1) // m) * m


def prepare_params(w1, b1, w2, b2):
    """PyTorch layout (out,in) -> kernel layout (in,out); pad N dims; weights in bf16."""
    w1p = jnp.zeros((D_IN, H_P), jnp.float32).at[:, :H].set(w1.T).astype(jnp.bfloat16)
    b1p = jnp.zeros((1, H_P), jnp.float32).at[0, :H].set(b1)
    w2p = jnp.zeros((H_P, D_OUT_P), jnp.float32).at[:H, :D_OUT].set(w2.T).astype(jnp.bfloat16)
    b2p = jnp.zeros((1, D_OUT_P), jnp.float32).at[0, :D_OUT].set(b2)
    return w1p, b1p, w2p, b2p


def _simplenet_forward_impl(x, params):
    """x: (B, 1000) f32; params from prepare_params(). Returns (B, 10) f32."""
    w1p, b1p, w2p, b2p = params
    B = x.shape[0]
    # Big tiles to amortize per-step overhead / fill the MXU; keep >=2 grid steps when B > 8
    # so the batch axis can shard across v7x's 2 TensorCores.
    TB = min(512, _round_up(max((B + 1) // 2, 8), 8))
    grid = (pl.cdiv(B, TB),)

    out = pl.pallas_call(
        mlp_kernel,
        out_shape=jax.ShapeDtypeStruct((B, D_OUT_P), jnp.float32),
        grid=grid,
        in_specs=[
            pl.BlockSpec((TB, D_IN), lambda i: (i, 0)),       # x tile, f32, full feature dim
            pl.BlockSpec((D_IN, H_P), lambda i: (0, 0)),      # w1 (bf16): VMEM-resident
            pl.BlockSpec((1, H_P), lambda i: (0, 0)),         # b1 (f32)
            pl.BlockSpec((H_P, D_OUT_P), lambda i: (0, 0)),   # w2 (bf16): VMEM-resident
            pl.BlockSpec((1, D_OUT_P), lambda i: (0, 0)),     # b2 (f32)
        ],
        out_specs=pl.BlockSpec((TB, D_OUT_P), lambda i: (i, 0)),
        compiler_params=pltpu.CompilerParams(
            dimension_semantics=("parallel",),                # batch tiles shard across TCs
        ),
    )(x, w1p, b1p, w2p, b2p)
    return out[:, :D_OUT]                                     # fuses with consumer under jit


simplenet_forward = jax.jit(_simplenet_forward_impl)


def init_params(key):
    """PyTorch nn.Linear shapes/init: weight (out, in), U(-1/sqrt(in), 1/sqrt(in))."""
    k1, k2, k3, k4 = jax.random.split(key, 4)
    bound1 = 1.0 / jnp.sqrt(float(D_IN))
    bound2 = 1.0 / jnp.sqrt(float(H))
    w1 = jax.random.uniform(k1, (H, D_IN), jnp.float32, -bound1, bound1)
    b1 = jax.random.uniform(k2, (H,), jnp.float32, -bound1, bound1)
    w2 = jax.random.uniform(k3, (D_OUT, H), jnp.float32, -bound2, bound2)
    b2 = jax.random.uniform(k4, (D_OUT,), jnp.float32, -bound2, bound2)
    return w1, b1, w2, b2


def reference_forward_f32(x, w1, b1, w2, b2):
    h = jnp.maximum(x @ w1.T + b1, 0.0)
    return h @ w2.T + b2


def reference_forward_bf16(x, w1, b1, w2, b2):
    # mirrors kernel numerics: bf16-rounded matmul operands, f32 accumulation/elementwise
    xb = x.astype(jnp.bfloat16).astype(jnp.float32)
    w1b = w1.astype(jnp.bfloat16).astype(jnp.float32)
    h = jnp.maximum(xb @ w1b.T + b1, 0.0)
    hb = h.astype(jnp.bfloat16).astype(jnp.float32)
    w2b = w2.astype(jnp.bfloat16).astype(jnp.float32)
    return hb @ w2b.T + b2


if __name__ == "__main__":
    key = jax.random.PRNGKey(0)
    kx, kp = jax.random.split(key)
    w1, b1, w2, b2 = init_params(kp)
    params = prepare_params(w1, b1, w2, b2)

    # tiny batch (single partial tile) and a larger, non-tile-aligned multi-tile batch
    for B in (4, 200):
        x = jax.random.normal(jax.random.fold_in(kx, B), (B, D_IN), jnp.float32)
        out = jax.block_until_ready(simplenet_forward(x, params))
        assert out.shape == (B, D_OUT)
        ref_bf16 = reference_forward_bf16(x, w1, b1, w2, b2)
        ref_f32 = reference_forward_f32(x, w1, b1, w2, b2)
        assert jnp.allclose(out, ref_bf16, atol=5e-3, rtol=5e-3), "mismatch vs bf16-matched reference"
        assert jnp.allclose(out, ref_f32, atol=3e-2, rtol=3e-2), "mismatch vs f32 reference"

    print("KERNEL_OK")
</pallas_src>

<mosaic_0001>
module attributes {stable_mosaic.version = 11 : i64} {
  func.func @mlp_kernel(%arg0: i32, %arg1: memref<8x1000xf32, #tpu.memory_space<vmem>>, %arg2: memref<1000x512xbf16, #tpu.memory_space<vmem>>, %arg3: memref<1x512xf32, #tpu.memory_space<vmem>>, %arg4: memref<512x128xbf16, #tpu.memory_space<vmem>>, %arg5: memref<1x128xf32, #tpu.memory_space<vmem>>, %arg6: memref<8x128xf32, #tpu.memory_space<vmem>>) attributes {dimension_semantics = [#tpu.dimension_semantics<parallel>], iteration_bounds = array<i64: 1>, scalar_prefetch = 0 : i64, scratch_operands = 0 : i64, tpu.core_type = #tpu.core_type<tc>, window_params = [{transform_indices = @transform_0, window_bounds = array<i64: 8, 1000>}, {pipeline_mode = #tpu.pipeline_mode<synchronous>, transform_indices = @transform_1, window_bounds = array<i64: 1000, 512>}, {pipeline_mode = #tpu.pipeline_mode<synchronous>, transform_indices = @transform_2, window_bounds = array<i64: 1, 512>}, {pipeline_mode = #tpu.pipeline_mode<synchronous>, transform_indices = @transform_3, window_bounds = array<i64: 512, 128>}, {pipeline_mode = #tpu.pipeline_mode<synchronous>, transform_indices = @transform_4, window_bounds = array<i64: 1, 128>}, {transform_indices = @transform_5, window_bounds = array<i64: 8, 128>}]} {
    %c0 = arith.constant 0 : index
    %c0_0 = arith.constant 0 : index
    %0 = vector.load %arg1[%c0, %c0_0] : memref<8x1000xf32, #tpu.memory_space<vmem>>, vector<8x1000xf32>
    %1 = arith.truncf %0 : vector<8x1000xf32> to vector<8x1000xbf16>
    %c0_1 = arith.constant 0 : index
    %c0_2 = arith.constant 0 : index
    %2 = vector.load %arg2[%c0_1, %c0_2] : memref<1000x512xbf16, #tpu.memory_space<vmem>>, vector<1000x512xbf16>
    %cst = arith.constant dense<0.000000e+00> : vector<8x512xf32>
    %3 = tpu.matmul %1, %2, %cst {dimension_numbers = #tpu.dot_dimension_numbers<[1], [0], [0], [1], [0, 0, 1, 1], [], []>} : vector<8x1000xbf16>, vector<1000x512xbf16>, vector<8x512xf32> -> vector<8x512xf32>
    %c0_3 = arith.constant 0 : index
    %c0_4 = arith.constant 0 : index
    %4 = vector.load %arg3[%c0_3, %c0_4] : memref<1x512xf32, #tpu.memory_space<vmem>>, vector<1x512xf32>
    %5 = vector.broadcast %4 : vector<1x512xf32> to vector<8x512xf32>
    %6 = arith.addf %3, %5 : vector<8x512xf32>
    %cst_5 = arith.constant 0.000000e+00 : f32
    %7 = vector.broadcast %cst_5 : f32 to vector<8x512xf32>
    %8 = arith.maximumf %6, %7 : vector<8x512xf32>
    %9 = arith.truncf %8 : vector<8x512xf32> to vector<8x512xbf16>
    %c0_6 = arith.constant 0 : index
    %c0_7 = arith.constant 0 : index
    %10 = vector.load %arg4[%c0_6, %c0_7] : memref<512x128xbf16, #tpu.memory_space<vmem>>, vector<512x128xbf16>
    %cst_8 = arith.constant dense<0.000000e+00> : vector<8x128xf32>
    %11 = tpu.matmul %9, %10, %cst_8 {dimension_numbers = #tpu.dot_dimension_numbers<[1], [0], [0], [1], [0, 0, 1, 1], [], []>} : vector<8x512xbf16>, vector<512x128xbf16>, vector<8x128xf32> -> vector<8x128xf32>
    %c0_9 = arith.constant 0 : index
    %c0_10 = arith.constant 0 : index
    %12 = vector.load %arg5[%c0_9, %c0_10] : memref<1x128xf32, #tpu.memory_space<vmem>>, vector<1x128xf32>
    %13 = vector.broadcast %12 : vector<1x128xf32> to vector<8x128xf32>
    %14 = arith.addf %11, %13 : vector<8x128xf32>
    %c0_11 = arith.constant 0 : index
    %c0_12 = arith.constant 0 : index
    %15 = vector.load %arg6[%c0_11, %c0_12] : memref<8x128xf32, #tpu.memory_space<vmem>>, vector<8x128xf32>
    tpu.vector_store %arg6[%c0_11, %c0_12], %14 {strides = array<i32>} : memref<8x128xf32, #tpu.memory_space<vmem>>, vector<8x128xf32>,
    return
  }
  func.func @transform_0(%arg0: i32) -> (i32, i32) {
    %c0_i32 = arith.constant 0 : i32
    %c0_i32_0 = arith.constant 0 : i32
    return %arg0, %c0_i32 : i32, i32
  }
  func.func @transform_1(%arg0: i32) -> (i32, i32) {
    %c0_i32 = arith.constant 0 : i32
    %c0_i32_0 = arith.constant 0 : i32
    %c0_i32_1 = arith.constant 0 : i32
    return %c0_i32, %c0_i32_0 : i32, i32
  }
  func.func @transform_2(%arg0: i32) -> (i32, i32) {
    %c0_i32 = arith.constant 0 : i32
    %c0_i32_0 = arith.constant 0 : i32
    %c0_i32_1 = arith.constant 0 : i32
    return %c0_i32, %c0_i32_0 : i32, i32
  }
  func.func @transform_3(%arg0: i32) -> (i32, i32) {
    %c0_i32 = arith.constant 0 : i32
    %c0_i32_0 = arith.constant 0 : i32
    %c0_i32_1 = arith.constant 0 : i32
    return %c0_i32, %c0_i32_0 : i32, i32
  }
  func.func @transform_4(%arg0: i32) -> (i32, i32) {
    %c0_i32 = arith.constant 0 : i32
    %c0_i32_0 = arith.constant 0 : i32
    %c0_i32_1 = arith.constant 0 : i32
    return %c0_i32, %c0_i32_0 : i32, i32
  }
  func.func @transform_5(%arg0: i32) -> (i32, i32) {
    %c0_i32 = arith.constant 0 : i32
    %c0_i32_0 = arith.constant 0 : i32
    return %arg0, %c0_i32 : i32, i32
  }
}

</mosaic_0001>

<llo_original>
// kernel: _simplenet_forward_impl.1
$region0: #{_simplenet_forward_impl.1}
  #allocation0 [shape = 'u32[]', space=smem, size = 0x4, offset = 0x4, fixed_abs, tag = 'smem constant byte address 0x4 - core index']
  #allocation1 [shape = 'u32[144,128]{1,0:T(1,128)}', space=vmem, size = 0x12000, scoped, tag = 'internal scratch']
  %s0 = inlined_call_operand.hbm [shape: f32[4,1000], index: 0, kind: input, shape index: {}]
  %s1 = inlined_call_operand.hbm [shape: bf16[1000,512], index: 1, kind: input, shape index: {}]
  %s2 = inlined_call_operand.vmem [shape: f32[1,512], index: 2, kind: input, shape index: {}]
  %s3 = inlined_call_operand.hbm [shape: bf16[512,128], index: 3, kind: input, shape index: {}]
  %s4 = inlined_call_operand.vmem [shape: f32[1,128], index: 4, kind: input, shape index: {}]
  %s5 = inlined_call_operand.hbm [shape: f32[4,128], index: 5, kind: output, shape index: {}]
  %s6 = sld [smem:[#allocation0]]
  $region42: #{_simplenet_forward_impl.1} parent=0
    _
  %s8 = ssub.s32 1, %s6
  %s9 = scalar_select 0, %s8, %s6
  $region1: #{_simplenet_forward_impl.1} parent=0
    #allocation2 [shape = 'u8[32768]{0}', space=vmem, size = 0x8000, scoped, tag = 'input window, operand 0, single buffered']
    #allocation3 [shape = 's32[1]{0}', space=sflag, size = 0x4, scoped, tag = 'scoped memory for _simplenet_forward_impl.1']
    #allocation4 [shape = 's32[1]{0}', space=sflag, size = 0x4, scoped, tag = 'scoped memory for _simplenet_forward_impl.1']
    #allocation5 [shape = 'u8[1024000]{0}', space=vmem, size = 0xfa000, scoped, tag = 'input window, operand 1, single buffered']
    #allocation6 [shape = 's32[1]{0}', space=sflag, size = 0x4, scoped, tag = 'scoped memory for _simplenet_forward_impl.1']
    #allocation7 [shape = 'u8[131072]{0}', space=vmem, size = 0x20000, scoped, tag = 'input window, operand 3, single buffered']
    #allocation8 [shape = 'u8[4096]{0}', space=vmem, size = 0x1000, scoped, tag = 'output window, operand 0, single buffered']
    %10 = vsyncpa [#allocation3], 0
    %11 = vsyncpa [#allocation6], 0
    %12 = vsyncpa [#allocation4], 0
    // Predicated region
    $region2: #{_simplenet_forward_impl.1} parent=1 // pred_check
      _
    $region3: #{_simplenet_forward_impl.1} parent=1 // pred_check_branch
      %14 = sbr.rel (0) target = $region5
    $region4: #{_simplenet_forward_impl.1} parent=1 // pred_region
      %s16 = ssub.s32 1024, 512
      %17 = vsyncadd [#allocation3], %s16
      %s18 = sshll.u32 [#allocation2], 4
      %s19 = int_to_ptr.vmem [resolvable:$true] %s18
      %24 = dma.hbm_to_vmem [thread:$0]  %s0, 512, %s19, [#allocation3], 512, 512, 32
    $region5: #{_simplenet_forward_impl.1} parent=1 // pred_fallthru
      _
    // Predicated region
    $region6: #{_simplenet_forward_impl.1} parent=1 // pred_check
      _
    $region7: #{_simplenet_forward_impl.1} parent=1 // pred_check_branch
      %26 = sbr.rel (0) target = $region9
    $region8: #{_simplenet_forward_impl.1} parent=1 // pred_region
      %s28 = ssub.s32 32000, 32000
      %29 = vsyncadd [#allocation6], %s28
      %s30 = sshll.u32 [#allocation5], 4
      %s31 = int_to_ptr.vmem [resolvable:$true] %s30
      %36 = dma.hbm_to_vmem [thread:$0]  %s1, 32000, %s31, [#allocation6], 256, 256, 16
    $region9: #{_simplenet_forward_impl.1} parent=1 // pred_fallthru
      _
    // Predicated region
    $region10: #{_simplenet_forward_impl.1} parent=1 // pred_check
      _
    $region11: #{_simplenet_forward_impl.1} parent=1 // pred_check_branch
      %38 = sbr.rel (0) target = $region13
    $region12: #{_simplenet_forward_impl.1} parent=1 // pred_region
      _
    $region13: #{_simplenet_forward_impl.1} parent=1 // pred_fallthru
      _
    // Predicated region
    $region14: #{_simplenet_forward_impl.1} parent=1 // pred_check
      _
    $region15: #{_simplenet_forward_impl.1} parent=1 // pred_check_branch
      %40 = sbr.rel (0) target = $region17
    $region16: #{_simplenet_forward_impl.1} parent=1 // pred_region
      %s42 = ssub.s32 4096, 4096
      %43 = vsyncadd [#allocation6], %s42
      %s44 = sshll.u32 [#allocation7], 4
      %s45 = int_to_ptr.vmem [resolvable:$true] %s44
      %50 = dma.hbm_to_vmem [thread:$0]  %s3, 4096, %s45, [#allocation6], 64, 64, 4
    $region17: #{_simplenet_forward_impl.1} parent=1 // pred_fallthru
      _
    // Predicated region
    $region18: #{_simplenet_forward_impl.1} parent=1 // pred_check
      _
    $region19: #{_simplenet_forward_impl.1} parent=1 // pred_check_branch
      %52 = sbr.rel (0) target = $region21
    $region20: #{_simplenet_forward_impl.1} parent=1 // pred_region
      _
    $region21: #{_simplenet_forward_impl.1} parent=1 // pred_fallthru
      _
    // Predicated region
    $region22: #{_simplenet_forward_impl.1} parent=1 // pred_check
      _
    $region23: #{_simplenet_forward_impl.1} parent=1 // pred_check_branch
      %54 = sbr.rel (0) target = $region25
    $region24: #{_simplenet_forward_impl.1} parent=1 // pred_region
      %55 = dma.done [#allocation3], 1024
    $region25: #{_simplenet_forward_impl.1} parent=1 // pred_fallthru
      _
    // Predicated region
    $region26: #{_simplenet_forward_impl.1} parent=1 // pred_check
      _
    $region27: #{_simplenet_forward_impl.1} parent=1 // pred_check_branch
      %57 = sbr.rel (0) target = $region29
    $region28: #{_simplenet_forward_impl.1} parent=1 // pred_region
      %58 = dma.done [#allocation6], 32000
    $region29: #{_simplenet_forward_impl.1} parent=1 // pred_fallthru
      _
    // Predicated region
    $region30: #{_simplenet_forward_impl.1} parent=1 // pred_check
      _
    $region31: #{_simplenet_forward_impl.1} parent=1 // pred_check_branch
      %60 = sbr.rel (0) target = $region33
    $region32: #{_simplenet_forward_impl.1} parent=1 // pred_region
      %61 = dma.done [#allocation6], 4096
    $region33: #{_simplenet_forward_impl.1} parent=1 // pred_fallthru
      _
    %v63 = vld [vmem:[#allocation2] sm:$0xff]
    %v64 = vld [vmem:[#allocation2 + $0x8] sm:$0xff]
    %v65 = vld [vmem:[#allocation2 + $0x10] sm:$0xff]
    %v66 = vld [vmem:[#allocation2 + $0x18] sm:$0xff]
    %v67 = vld [vmem:[#allocation2 + $0x20] sm:$0xff]
    %v68 = vld [vmem:[#allocation2 + $0x28] sm:$0xff]
    %v69 = vld [vmem:[#allocation2 + $0x30] sm:$0xff]
    %v70 = vld [vmem:[#allocation2 + $0x38] sm:$0xff]
    %v79 = vcombine.low %v63, %v67
    %v80 = vcombine.high %v63, %v67
    %v81 = vcombine.low %v64, %v68
    %v82 = vcombine.high %v64, %v68
    %v83 = vcombine.low %v65, %v69
    %v84 = vcombine.high %v65, %v69
    %v85 = vcombine.low %v66, %v70
    %v86 = vcombine.high %v66, %v70
    %v95 = vpack.c.bf16 %v79, %v79
    %v96 = vpack.c.bf16 %v80, %v80
    %v97 = vpack.c.bf16 %v81, %v81
    %v98 = vpack.c.bf16 %v82, %v82
    %v99 = vpack.c.bf16 %v83, %v83
    %v100 = vpack.c.bf16 %v84, %v84
    %v101 = vpack.c.bf16 %v85, %v85
    %v102 = vpack.c.bf16 %v86, %v86
    %v103 = vld [vmem:[#allocation5] sm:$0xff]
    %v104 = vld [vmem:[#allocation5 + $0x8] sm:$0xff]
    %v105 = vld [vmem:[#allocation5 + $0x10] sm:$0xff]
    %v106 = vld [vmem:[#allocation5 + $0x18] sm:$0xff]
    %v107 = vld [vmem:[#allocation5 + $0x20] sm:$0xff]
    %v108 = vld [vmem:[#allocation5 + $0x28] sm:$0xff]
    %v109 = vld [vmem:[#allocation5 + $0x30] sm:$0xff]
    %v110 = vld [vmem:[#allocation5 + $0x38] sm:$0xff]
    %v111 = vld [vmem:[#allocation5 + $0x40] sm:$0xff]
    %v112 = vld [vmem:[#allocation5 + $0x48] sm:$0xff]
    %v113 = vld [vmem:[#allocation5 + $0x50] sm:$0xff]
    %v114 = vld [vmem:[#allocation5 + $0x58] sm:$0xff]
    %v115 = vld [vmem:[#allocation5 + $0x60] sm:$0xff]
    %v116 = vld [vmem:[#allocation5 + $0x68] sm:$0xff]
    %v117 = vld [vmem:[#allocation5 + $0x70] sm:$0xff]
    %v118 = vld [vmem:[#allocation5 + $0x78] sm:$0xff]
    %v119 = vld [vmem:[#allocation5 + $0x80] sm:$0xff]
    %v120 = vld [vmem:[#allocation5 + $0x88] sm:$0xff]
    %v121 = vld [vmem:[#allocation5 + $0x90] sm:$0xff]
    %v122 = vld [vmem:[#allocation5 + $0x98] sm:$0xff]
    %v123 = vld [vmem:[#allocation5 + $0xa0] sm:$0xff]
    %v124 = vld [vmem:[#allocation5 + $0xa8] sm:$0xff]
    %v125 = vld [vmem:[#allocation5 + $0xb0] sm:$0xff]
    %v126 = vld [vmem:[#allocation5 + $0xb8] sm:$0xff]
    %v127 = vld [vmem:[#allocation5 + $0xc0] sm:$0xff]
    %v128 = vld [vmem:[#allocation5 + $0xc8] sm:$0xff]
    %v129 = vld [vmem:[#allocation5 + $0xd0] sm:$0xff]
    %v130 = vld [vmem:[#allocation5 + $0xd8] sm:$0xff]
    %v131 = vld [vmem:[#allocation5 + $0xe0] sm:$0xff]
    %v132 = vld [vmem:[#allocation5 + $0xe8] sm:$0xff]
    %v133 = vld [vmem:[#allocation5 + $0xf0] sm:$0xff]
    %v134 = vld [vmem:[#allocation5 + $0xf8] sm:$0xff]
    %v135 = vld [vmem:[#allocation5 + $0x100] sm:$0xff]
    %v136 = vld [vmem:[#allocation5 + $0x108] sm:$0xff]
    %v137 = vld [vmem:[#allocation5 + $0x110] sm:$0xff]
    %v138 = vld [vmem:[#allocation5 + $0x118] sm:$0xff]
    %v139 = vld [vmem:[#allocation5 + $0x120] sm:$0xff]
    %v140 = vld [vmem:[#allocation5 + $0x128] sm:$0xff]
    %v141 = vld [vmem:[#allocation5 + $0x130] sm:$0xff]
    %v142 = vld [vmem:[#allocation5 + $0x138] sm:$0xff]
    %v143 = vld [vmem:[#allocation5 + $0x140] sm:$0xff]
    %v144 = vld [vmem:[#allocation5 + $0x148] sm:$0xff]
    %v145 = vld [vmem:[#allocation5 + $0x150] sm:$0xff]
    %v146 = vld [vmem:[#allocation5 + $0x158] sm:$0xff]
    %v147 = vld [vmem:[#allocation5 + $0x160] sm:$0xff]
    %v148 = vld [vmem:[#allocation5 + $0x168] sm:$0xff]
    %v149 = vld [vmem:[#allocation5 + $0x170] sm:$0xff]
    %v150 = vld [vmem:[#allocation5 + $0x178] sm:$0xff]
    %v151 = vld [vmem:[#allocation5 + $0x180] sm:$0xff]
    %v152 = vld [vmem:[#allocation5 + $0x188] sm:$0xff]
    %v153 = vld [vmem:[#allocation5 + $0x190] sm:$0xff]
    %v154 = vld [vmem:[#allocation5 + $0x198] sm:$0xff]
    %v155 = vld [vmem:[#allocation5 + $0x1a0] sm:$0xff]
    %v156 = vld [vmem:[#allocation5 + $0x1a8] sm:$0xff]
    %v157 = vld [vmem:[#allocation5 + $0x1b0] sm:$0xff]
    %v158 = vld [vmem:[#allocation5 + $0x1b8] sm:$0xff]
    %v159 = vld [vmem:[#allocation5 + $0x1c0] sm:$0xff]
    %v160 = vld [vmem:[#allocation5 + $0x1c8] sm:$0xff]
    %v161 = vld [vmem:[#allocation5 + $0x1d0] sm:$0xff]
    %v162 = vld [vmem:[#allocation5 + $0x1d8] sm:$0xff]
    %v163 = vld [vmem:[#allocation5 + $0x1e0] sm:$0xff]
    %v164 = vld [vmem:[#allocation5 + $0x1e8] sm:$0xff]
    %v165 = vld [vmem:[#allocation5 + $0x1f0] sm:$0xff]
    %v166 = vld [vmem:[#allocation5 + $0x1f8] sm:$0xff]
    %v167 = vld [vmem:[#allocation5 + $0x200] sm:$0xff]
    %v168 = vld [vmem:[#allocation5 + $0x208] sm:$0xff]
    %v169 = vld [vmem:[#allocation5 + $0x210] sm:$0xff]
    %v170 = vld [vmem:[#allocation5 + $0x218] sm:$0xff]
    %v171 = vld [vmem:[#allocation5 + $0x220] sm:$0xff]
    %v172 = vld [vmem:[#allocation5 + $0x228] sm:$0xff]
    %v173 = vld [vmem:[#allocation5 + $0x230] sm:$0xff]
    %v174 = vld [vmem:[#allocation5 + $0x238] sm:$0xff]
    %v175 = vld [vmem:[#allocation5 + $0x240] sm:$0xff]
    %v176 = vld [vmem:[#allocation5 + $0x248] sm:$0xff]
    %v177 = vld [vmem:[#allocation5 + $0x250] sm:$0xff]
    %v178 = vld [vmem:[#allocation5 + $0x258] sm:$0xff]
    %v179 = vld [vmem:[#allocation5 + $0x260] sm:$0xff]
    %v180 = vld [vmem:[#allocation5 + $0x268] sm:$0xff]
    %v181 = vld [vmem:[#allocation5 + $0x270] sm:$0xff]
    %v182 = vld [vmem:[#allocation5 + $0x278] sm:$0xff]
    %v183 = vld [vmem:[#allocation5 + $0x280] sm:$0xff]
    %v184 = vld [vmem:[#allocation5 + $0x288] sm:$0xff]
    %v185 = vld [vmem:[#allocation5 + $0x290] sm:$0xff]
    %v186 = vld [vmem:[#allocation5 + $0x298] sm:$0xff]
    %v187 = vld [vmem:[#allocation5 + $0x2a0] sm:$0xff]
    %v188 = vld [vmem:[#allocation5 + $0x2a8] sm:$0xff]
    %v189 = vld [vmem:[#allocation5 + $0x2b0] sm:$0xff]
    %v190 = vld [vmem:[#allocation5 + $0x2b8] sm:$0xff]
    %v191 = vld [vmem:[#allocation5 + $0x2c0] sm:$0xff]
    %v192 = vld [vmem:[#allocation5 + $0x2c8] sm:$0xff]
    %v193 = vld [vmem:[#allocation5 + $0x2d0] sm:$0xff]
    %v194 = vld [vmem:[#allocation5 + $0x2d8] sm:$0xff]
    %v195 = vld [vmem:[#allocation5 + $0x2e0] sm:$0xff]
    %v196 = vld [vmem:[#allocation5 + $0x2e8] sm:$0xff]
    %v197 = vld [vmem:[#allocation5 + $0x2f0] sm:$0xff]
    %v198 = vld [vmem:[#allocation5 + $0x2f8] sm:$0xff]
    %v199 = vld [vmem:[#allocation5 + $0x300] sm:$0xff]
    %v200 = vld [vmem:[#allocation5 + $0x308] sm:$0xff]
    %v201 = vld [vmem:[#allocation5 + $0x310] sm:$0xff]
    %v202 = vld [vmem:[#allocation5 + $0x318] sm:$0xff]
    %v203 = vld [vmem:[#allocation5 + $0x320] sm:$0xff]
    %v204 = vld [vmem:[#allocation5 + $0x328] sm:$0xff]
    %v205 = vld [vmem:[#allocation5 + $0x330] sm:$0xff]
    %v206 = vld [vmem:[#allocation5 + $0x338] sm:$0xff]
    %v207 = vld [vmem:[#allocation5 + $0x340] sm:$0xff]
    %v208 = vld [vmem:[#allocation5 + $0x348] sm:$0xff]
    %v209 = vld [vmem:[#allocation5 + $0x350] sm:$0xff]
    %v210 = vld [vmem:[#allocation5 + $0x358] sm:$0xff]
    %v211 = vld [vmem:[#allocation5 + $0x360] sm:$0xff]
    %v212 = vld [vmem:[#allocation5 + $0x368] sm:$0xff]
    %v213 = vld [vmem:[#allocation5 + $0x370] sm:$0xff]
    %v214 = vld [vmem:[#allocation5 + $0x378] sm:$0xff]
    %v215 = vld [vmem:[#allocation5 + $0x380] sm:$0xff]
    %v216 = vld [vmem:[#allocation5 + $0x388] sm:$0xff]
    %v217 = vld [vmem:[#allocation5 + $0x390] sm:$0xff]
    %v218 = vld [vmem:[#allocation5 + $0x398] sm:$0xff]
    %v219 = vld [vmem:[#allocation5 + $0x3a0] sm:$0xff]
    %v220 = vld [vmem:[#allocation5 + $0x3a8] sm:$0xff]
    %v221 = vld [vmem:[#allocation5 + $0x3b0] sm:$0xff]
    %v222 = vld [vmem:[#allocation5 + $0x3b8] sm:$0xff]
    %v223 = vld [vmem:[#allocation5 + $0x3c0] sm:$0xff]
    %v224 = vld [vmem:[#allocation5 + $0x3c8] sm:$0xff]
    %v225 = vld [vmem:[#allocation5 + $0x3d0] sm:$0xff]
    %v226 = vld [vmem:[#allocation5 + $0x3d8] sm:$0xff]
    %v227 = vld [vmem:[#allocation5 + $0x3e0] sm:$0xff]
    %v228 = vld [vmem:[#allocation5 + $0x3e8] sm:$0xff]
    %v229 = vld [vmem:[#allocation5 + $0x3f0] sm:$0xff]
    %v230 = vld [vmem:[#allocation5 + $0x3f8] sm:$0xff]
    %v231 = vld [vmem:[#allocation5 + $0x400] sm:$0xff]
    %v232 = vld [vmem:[#allocation5 + $0x408] sm:$0xff]
    %v233 = vld [vmem:[#allocation5 + $0x410] sm:$0xff]
    %v234 = vld [vmem:[#allocation5 + $0x418] sm:$0xff]
    %v235 = vld [vmem:[#allocation5 + $0x420] sm:$0xff]
    %v236 = vld [vmem:[#allocation5 + $0x428] sm:$0xff]
    %v237 = vld [vmem:[#allocation5 + $0x430] sm:$0xff]
    %v238 = vld [vmem:[#allocation5 + $0x438] sm:$0xff]
    %v239 = vld [vmem:[#allocation5 + $0x440] sm:$0xff]
    %v240 = vld [vmem:[#allocation5 + $0x448] sm:$0xff]
    %v241 = vld [vmem:[#allocation5 + $0x450] sm:$0xff]
    %v242 = vld [vmem:[#allocation5 + $0x458] sm:$0xff]
    %v243 = vld [vmem:[#allocation5 + $0x460] sm:$0xff]
    %v244 = vld [vmem:[#allocation5 + $0x468] sm:$0xff]
    %v245 = vld [vmem:[#allocation5 + $0x470] sm:$0xff]
    %v246 = vld [vmem:[#allocation5 + $0x478] sm:$0xff]
    %v247 = vld [vmem:[#allocation5 + $0x480] sm:$0xff]
    %v248 = vld [vmem:[#allocation5 + $0x488] sm:$0xff]
    %v249 = vld [vmem:[#allocation5 + $0x490] sm:$0xff]
    %v250 = vld [vmem:[#allocation5 + $0x498] sm:$0xff]
    %v251 = vld [vmem:[#allocation5 + $0x4a0] sm:$0xff]
    %v252 = vld [vmem:[#allocation5 + $0x4a8] sm:$0xff]
    %v253 = vld [vmem:[#allocation5 + $0x4b0] sm:$0xff]
    %v254 = vld [vmem:[#allocation5 + $0x4b8] sm:$0xff]
    %v255 = vld [vmem:[#allocation5 + $0x4c0] sm:$0xff]
    %v256 = vld [vmem:[#allocation5 + $0x4c8] sm:$0xff]
    %v257 = vld [vmem:[#allocation5 + $0x4d0] sm:$0xff]
    %v258 = vld [vmem:[#allocation5 + $0x4d8] sm:$0xff]
    %v259 = vld [vmem:[#allocation5 + $0x4e0] sm:$0xff]
    %v260 = vld [vmem:[#allocation5 + $0x4e8] sm:$0xff]
    %v261 = vld [vmem:[#allocation5 + $0x4f0] sm:$0xff]
    %v262 = vld [vmem:[#allocation5 + $0x4f8] sm:$0xff]
    %v263 = vld [vmem:[#allocation5 + $0x500] sm:$0xff]
    %v264 = vld [vmem:[#allocation5 + $0x508] sm:$0xff]
    %v265 = vld [vmem:[#allocation5 + $0x510] sm:$0xff]
    %v266 = vld [vmem:[#allocation5 + $0x518] sm:$0xff]
    %v267 = vld [vmem:[#allocation5 + $0x520] sm:$0xff]
    %v268 = vld [vmem:[#allocation5 + $0x528] sm:$0xff]
    %v269 = vld [vmem:[#allocation5 + $0x530] sm:$0xff]
    %v270 = vld [vmem:[#allocation5 + $0x538] sm:$0xff]
    %v271 = vld [vmem:[#allocation5 + $0x540] sm:$0xff]
    %v272 = vld [vmem:[#allocation5 + $0x548] sm:$0xff]
    %v273 = vld [vmem:[#allocation5 + $0x550] sm:$0xff]
    %v274 = vld [vmem:[#allocation5 + $0x558] sm:$0xff]
    %v275 = vld [vmem:[#allocation5 + $0x560] sm:$0xff]
    %v276 = vld [vmem:[#allocation5 + $0x568] sm:$0xff]
    %v277 = vld [vmem:[#allocation5 + $0x570] sm:$0xff]
    %v278 = vld [vmem:[#allocation5 + $0x578] sm:$0xff]
    %v279 = vld [vmem:[#allocation5 + $0x580] sm:$0xff]
    %v280 = vld [vmem:[#allocation5 + $0x588] sm:$0xff]
    %v281 = vld [vmem:[#allocation5 + $0x590] sm:$0xff]
    %v282 = vld [vmem:[#allocation5 + $0x598] sm:$0xff]
    %v283 = vld [vmem:[#allocation5 + $0x5a0] sm:$0xff]
    %v284 = vld [vmem:[#allocation5 + $0x5a8] sm:$0xff]
    %v285 = vld [vmem:[#allocation5 + $0x5b0] sm:$0xff]
    %v286 = vld [vmem:[#allocation5 + $0x5b8] sm:$0xff]
    %v287 = vld [vmem:[#allocation5 + $0x5c0] sm:$0xff]
    %v288 = vld [vmem:[#allocation5 + $0x5c8] sm:$0xff]
    %v289 = vld [vmem:[#allocation5 + $0x5d0] sm:$0xff]
    %v290 = vld [vmem:[#allocation5 + $0x5d8] sm:$0xff]
    %v291 = vld [vmem:[#allocation5 + $0x5e0] sm:$0xff]
    %v292 = vld [vmem:[#allocation5 + $0x5e8] sm:$0xff]
    %v293 = vld [vmem:[#allocation5 + $0x5f0] sm:$0xff]
    %v294 = vld [vmem:[#allocation5 + $0x5f8] sm:$0xff]
    %v295 = vld [vmem:[#allocation5 + $0x600] sm:$0xff]
    %v296 = vld [vmem:[#allocation5 + $0x608] sm:$0xff]
    %v297 = vld [vmem:[#allocation5 + $0x610] sm:$0xff]
    %v298 = vld [vmem:[#allocation5 + $0x618] sm:$0xff]
    %v299 = vld [vmem:[#allocation5 + $0x620] sm:$0xff]
    %v300 = vld [vmem:[#allocation5 + $0x628] sm:$0xff]
    %v301 = vld [vmem:[#allocation5 + $0x630] sm:$0xff]
    %v302 = vld [vmem:[#allocation5 + $0x638] sm:$0xff]
    %v303 = vld [vmem:[#allocation5 + $0x640] sm:$0xff]
    %v304 = vld [vmem:[#allocation5 + $0x648] sm:$0xff]
    %v305 = vld [vmem:[#allocation5 + $0x650] sm:$0xff]
    %v306 = vld [vmem:[#allocation5 + $0x658] sm:$0xff]
    %v307 = vld [vmem:[#allocation5 + $0x660] sm:$0xff]
    %v308 = vld [vmem:[#allocation5 + $0x668] sm:$0xff]
    %v309 = vld [vmem:[#allocation5 + $0x670] sm:$0xff]
    %v310 = vld [vmem:[#allocation5 + $0x678] sm:$0xff]
    %v311 = vld [vmem:[#allocation5 + $0x680] sm:$0xff]
    %v312 = vld [vmem:[#allocation5 + $0x688] sm:$0xff]
    %v313 = vld [vmem:[#allocation5 + $0x690] sm:$0xff]
    %v314 = vld [vmem:[#allocation5 + $0x698] sm:$0xff]
    %v315 = vld [vmem:[#allocation5 + $0x6a0] sm:$0xff]
    %v316 = vld [vmem:[#allocation5 + $0x6a8] sm:$0xff]
    %v317 = vld [vmem:[#allocation5 + $0x6b0] sm:$0xff]
    %v318 = vld [vmem:[#allocation5 + $0x6b8] sm:$0xff]
    %v319 = vld [vmem:[#allocation5 + $0x6c0] sm:$0xff]
    %v320 = vld [vmem:[#allocation5 + $0x6c8] sm:$0xff]
    %v321 = vld [vmem:[#allocation5 + $0x6d0] sm:$0xff]
    %v322 = vld [vmem:[#allocation5 + $0x6d8] sm:$0xff]
    %v323 = vld [vmem:[#allocation5 + $0x6e0] sm:$0xff]
    %v324 = vld [vmem:[#allocation5 + $0x6e8] sm:$0xff]
    %v325 = vld [vmem:[#allocation5 + $0x6f0] sm:$0xff]
    %v326 = vld [vmem:[#allocation5 + $0x6f8] sm:$0xff]
    %v327 = vld [vmem:[#allocation5 + $0x700] sm:$0xff]
    %v328 = vld [vmem:[#allocation5 + $0x708] sm:$0xff]
    %v329 = vld [vmem:[#allocation5 + $0x710] sm:$0xff]
    %v330 = vld [vmem:[#allocation5 + $0x718] sm:$0xff]
    %v331 = vld [vmem:[#allocation5 + $0x720] sm:$0xff]
    %v332 = vld [vmem:[#allocation5 + $0x728] sm:$0xff]
    %v333 = vld [vmem:[#allocation5 + $0x730] sm:$0xff]
    %v334 = vld [vmem:[#allocation5 + $0x738] sm:$0xff]
    %v335 = vld [vmem:[#allocation5 + $0x740] sm:$0xff]
    %v336 = vld [vmem:[#allocation5 + $0x748] sm:$0xff]
    %v337 = vld [vmem:[#allocation5 + $0x750] sm:$0xff]
    %v338 = vld [vmem:[#allocation5 + $0x758] sm:$0xff]
    %v339 = vld [vmem:[#allocation5 + $0x760] sm:$0xff]
    %v340 = vld [vmem:[#allocation5 + $0x768] sm:$0xff]
    %v341 = vld [vmem:[#allocation5 + $0x770] sm:$0xff]
    %v342 = vld [vmem:[#allocation5 + $0x778] sm:$0xff]
    %v343 = vld [vmem:[#allocation5 + $0x780] sm:$0xff]
    %v344 = vld [vmem:[#allocation5 + $0x788] sm:$0xff]
    %v345 = vld [vmem:[#allocation5 + $0x790] sm:$0xff]
    %v346 = vld [vmem:[#allocation5 + $0x798] sm:$0xff]
    %v347 = vld [vmem:[#allocation5 + $0x7a0] sm:$0xff]
    %v348 = vld [vmem:[#allocation5 + $0x7a8] sm:$0xff]
    %v349 = vld [vmem:[#allocation5 + $0x7b0] sm:$0xff]
    %v350 = vld [vmem:[#allocation5 + $0x7b8] sm:$0xff]
    %v351 = vld [vmem:[#allocation5 + $0x7c0] sm:$0xff]
    %v352 = vld [vmem:[#allocation5 + $0x7c8] sm:$0xff]
    %v353 = vld [vmem:[%s2] sm:$0xf]
    %v355 = vlaneseq
    %v356 = vshrl.u32 %v355, 7
    %v357 = vsub.s32 0, %v356
    %v358 = vrot.slane %v353, %v357
    %v359 = vlaneseq
    %v360 = vshrl.u32 %v359, 7
    %v361 = vsub.s32 1, %v360
    %v362 = vrot.slane %v353, %v361
    %v363 = vlaneseq
    %v364 = vshrl.u32 %v363, 7
    %v365 = vsub.s32 2, %v364
    %v366 = vrot.slane %v353, %v365
    %v367 = vlaneseq
    %v368 = vshrl.u32 %v367, 7
    %v369 = vsub.s32 3, %v368
    %v370 = vrot.slane %v353, %v369
    %v625 = vunpack.c.l.b16 %v103
    %v626 = vunpack.c.h.b16 %v103
    %v627 = vunpack.c.l.b16 %v104
    %v628 = vunpack.c.h.b16 %v104
    %v629 = vunpack.c.l.b16 %v105
    %v630 = vunpack.c.h.b16 %v105
    %v631 = vunpack.c.l.b16 %v106
    %v632 = vunpack.c.h.b16 %v106
    %v633 = vunpack.c.l.b16 %v107
    %v634 = vunpack.c.h.b16 %v107
    %v635 = vunpack.c.l.b16 %v108
    %v636 = vunpack.c.h.b16 %v108
    %v637 = vunpack.c.l.b16 %v109
    %v638 = vunpack.c.h.b16 %v109
    %v639 = vunpack.c.l.b16 %v110
    %v640 = vunpack.c.h.b16 %v110
    %v641 = vunpack.c.l.b16 %v111
    %v642 = vunpack.c.h.b16 %v111
    %v643 = vunpack.c.l.b16 %v112
    %v644 = vunpack.c.h.b16 %v112
    %v645 = vunpack.c.l.b16 %v113
    %v646 = vunpack.c.h.b16 %v113
    %v647 = vunpack.c.l.b16 %v114
    %v648 = vunpack.c.h.b16 %v114
    %v649 = vunpack.c.l.b16 %v115
    %v650 = vunpack.c.h.b16 %v115
    %v651 = vunpack.c.l.b16 %v116
    %v652 = vunpack.c.h.b16 %v116
    %v653 = vunpack.c.l.b16 %v117
    %v654 = vunpack.c.h.b16 %v117
    %v655 = vunpack.c.l.b16 %v118
    %v656 = vunpack.c.h.b16 %v118
    %v657 = vunpack.c.l.b16 %v119
    %v658 = vunpack.c.h.b16 %v119
    %v659 = vunpack.c.l.b16 %v120
    %v660 = vunpack.c.h.b16 %v120
    %v661 = vunpack.c.l.b16 %v121
    %v662 = vunpack.c.h.b16 %v121
    %v663 = vunpack.c.l.b16 %v122
    %v664 = vunpack.c.h.b16 %v122
    %v665 = vunpack.c.l.b16 %v123
    %v666 = vunpack.c.h.b16 %v123
    %v667 = vunpack.c.l.b16 %v124
    %v668 = vunpack.c.h.b16 %v124
    %v669 = vunpack.c.l.b16 %v125
    %v670 = vunpack.c.h.b16 %v125
    %v671 = vunpack.c.l.b16 %v126
    %v672 = vunpack.c.h.b16 %v126
    %v673 = vunpack.c.l.b16 %v127
    %v674 = vunpack.c.h.b16 %v127
    %v675 = vunpack.c.l.b16 %v128
    %v676 = vunpack.c.h.b16 %v128
    %v677 = vunpack.c.l.b16 %v129
    %v678 = vunpack.c.h.b16 %v129
    %v679 = vunpack.c.l.b16 %v130
    %v680 = vunpack.c.h.b16 %v130
    %v681 = vunpack.c.l.b16 %v131
    %v682 = vunpack.c.h.b16 %v131
    %v683 = vunpack.c.l.b16 %v132
    %v684 = vunpack.c.h.b16 %v132
    %v685 = vunpack.c.l.b16 %v133
    %v686 = vunpack.c.h.b16 %v133
    %v687 = vunpack.c.l.b16 %v134
    %v688 = vunpack.c.h.b16 %v134
    %v689 = vunpack.c.l.b16 %v135
    %v690 = vunpack.c.h.b16 %v135
    %v691 = vunpack.c.l.b16 %v136
    %v692 = vunpack.c.h.b16 %v136
    %v693 = vunpack.c.l.b16 %v137
    %v694 = vunpack.c.h.b16 %v137
    %v695 = vunpack.c.l.b16 %v138
    %v696 = vunpack.c.h.b16 %v138
    %v697 = vunpack.c.l.b16 %v139
    %v698 = vunpack.c.h.b16 %v139
    %v699 = vunpack.c.l.b16 %v140
    %v700 = vunpack.c.h.b16 %v140
    %v701 = vunpack.c.l.b16 %v141
    %v702 = vunpack.c.h.b16 %v141
    %v703 = vunpack.c.l.b16 %v142
    %v704 = vunpack.c.h.b16 %v142
    %v705 = vunpack.c.l.b16 %v143
    %v706 = vunpack.c.h.b16 %v143
    %v707 = vunpack.c.l.b16 %v144
    %v708 = vunpack.c.h.b16 %v144
    %v709 = vunpack.c.l.b16 %v145
    %v710 = vunpack.c.h.b16 %v145
    %v711 = vunpack.c.l.b16 %v146
    %v712 = vunpack.c.h.b16 %v146
    %v713 = vunpack.c.l.b16 %v147
    %v714 = vunpack.c.h.b16 %v147
    %v715 = vunpack.c.l.b16 %v148
    %v716 = vunpack.c.h.b16 %v148
    %v717 = vunpack.c.l.b16 %v149
    %v718 = vunpack.c.h.b16 %v149
    %v719 = vunpack.c.l.b16 %v150
    %v720 = vunpack.c.h.b16 %v150
    %v721 = vunpack.c.l.b16 %v151
    %v722 = vunpack.c.h.b16 %v151
    %v723 = vunpack.c.l.b16 %v152
    %v724 = vunpack.c.h.b16 %v152
    %v725 = vunpack.c.l.b16 %v153
    %v726 = vunpack.c.h.b16 %v153
    %v727 = vunpack.c.l.b16 %v154
    %v728 = vunpack.c.h.b16 %v154
    %v729 = vunpack.c.l.b16 %v155
    %v730 = vunpack.c.h.b16 %v155
    %v731 = vunpack.c.l.b16 %v156
    %v732 = vunpack.c.h.b16 %v156
    %v733 = vunpack.c.l.b16 %v157
    %v734 = vunpack.c.h.b16 %v157
    %v735 = vunpack.c.l.b16 %v158
    %v736 = vunpack.c.h.b16 %v158
    %v737 = vunpack.c.l.b16 %v159
    %v738 = vunpack.c.h.b16 %v159
    %v739 = vunpack.c.l.b16 %v160
    %v740 = vunpack.c.h.b16 %v160
    %v741 = vunpack.c.l.b16 %v161
    %v742 = vunpack.c.h.b16 %v161
    %v743 = vunpack.c.l.b16 %v162
    %v744 = vunpack.c.h.b16 %v162
    %v745 = vunpack.c.l.b16 %v163
    %v746 = vunpack.c.h.b16 %v163
    %v747 = vunpack.c.l.b16 %v164
    %v748 = vunpack.c.h.b16 %v164
    %v749 = vunpack.c.l.b16 %v165
    %v750 = vunpack.c.h.b16 %v165
    %v751 = vunpack.c.l.b16 %v166
    %v752 = vunpack.c.h.b16 %v166
    %v753 = vunpack.c.l.b16 %v167
    %v754 = vunpack.c.h.b16 %v167
    %v755 = vunpack.c.l.b16 %v168
    %v756 = vunpack.c.h.b16 %v168
    %v757 = vunpack.c.l.b16 %v169
    %v758 = vunpack.c.h.b16 %v169
    %v759 = vunpack.c.l.b16 %v170
    %v760 = vunpack.c.h.b16 %v170
    %v761 = vunpack.c.l.b16 %v171
    %v762 = vunpack.c.h.b16 %v171
    %v763 = vunpack.c.l.b16 %v172
    %v764 = vunpack.c.h.b16 %v172
    %v765 = vunpack.c.l.b16 %v173
    %v766 = vunpack.c.h.b16 %v173
    %v767 = vunpack.c.l.b16 %v174
    %v768 = vunpack.c.h.b16 %v174
    %v769 = vunpack.c.l.b16 %v175
    %v770 = vunpack.c.h.b16 %v175
    %v771 = vunpack.c.l.b16 %v176
    %v772 = vunpack.c.h.b16 %v176
    %v773 = vunpack.c.l.b16 %v177
    %v774 = vunpack.c.h.b16 %v177
    %v775 = vunpack.c.l.b16 %v178
    %v776 = vunpack.c.h.b16 %v178
    %v777 = vunpack.c.l.b16 %v179
    %v778 = vunpack.c.h.b16 %v179
    %v779 = vunpack.c.l.b16 %v180
    %v780 = vunpack.c.h.b16 %v180
    %v781 = vunpack.c.l.b16 %v181
    %v782 = vunpack.c.h.b16 %v181
    %v783 = vunpack.c.l.b16 %v182
    %v784 = vunpack.c.h.b16 %v182
    %v785 = vunpack.c.l.b16 %v183
    %v786 = vunpack.c.h.b16 %v183
    %v787 = vunpack.c.l.b16 %v184
    %v788 = vunpack.c.h.b16 %v184
    %v789 = vunpack.c.l.b16 %v185
    %v790 = vunpack.c.h.b16 %v185
    %v791 = vunpack.c.l.b16 %v186
    %v792 = vunpack.c.h.b16 %v186
    %v793 = vunpack.c.l.b16 %v187
    %v794 = vunpack.c.h.b16 %v187
    %v795 = vunpack.c.l.b16 %v188
    %v796 = vunpack.c.h.b16 %v188
    %v797 = vunpack.c.l.b16 %v189
    %v798 = vunpack.c.h.b16 %v189
    %v799 = vunpack.c.l.b16 %v190
    %v800 = vunpack.c.h.b16 %v190
    %v801 = vunpack.c.l.b16 %v191
    %v802 = vunpack.c.h.b16 %v191
    %v803 = vunpack.c.l.b16 %v192
    %v804 = vunpack.c.h.b16 %v192
    %v805 = vunpack.c.l.b16 %v193
    %v806 = vunpack.c.h.b16 %v193
    %v807 = vunpack.c.l.b16 %v194
    %v808 = vunpack.c.h.b16 %v194
    %v809 = vunpack.c.l.b16 %v195
    %v810 = vunpack.c.h.b16 %v195
    %v811 = vunpack.c.l.b16 %v196
    %v812 = vunpack.c.h.b16 %v196
    %v813 = vunpack.c.l.b16 %v197
    %v814 = vunpack.c.h.b16 %v197
    %v815 = vunpack.c.l.b16 %v198
    %v816 = vunpack.c.h.b16 %v198
    %v817 = vunpack.c.l.b16 %v199
    %v818 = vunpack.c.h.b16 %v199
    %v819 = vunpack.c.l.b16 %v200
    %v820 = vunpack.c.h.b16 %v200
    %v821 = vunpack.c.l.b16 %v201
    %v822 = vunpack.c.h.b16 %v201
    %v823 = vunpack.c.l.b16 %v202
    %v824 = vunpack.c.h.b16 %v202
    %v825 = vunpack.c.l.b16 %v203
    %v826 = vunpack.c.h.b16 %v203
    %v827 = vunpack.c.l.b16 %v204
    %v828 = vunpack.c.h.b16 %v204
    %v829 = vunpack.c.l.b16 %v205
    %v830 = vunpack.c.h.b16 %v205
    %v831 = vunpack.c.l.b16 %v206
    %v832 = vunpack.c.h.b16 %v206
    %v833 = vunpack.c.l.b16 %v207
    %v834 = vunpack.c.h.b16 %v207
    %v835 = vunpack.c.l.b16 %v208
    %v836 = vunpack.c.h.b16 %v208
    %v837 = vunpack.c.l.b16 %v209
    %v838 = vunpack.c.h.b16 %v209
    %v839 = vunpack.c.l.b16 %v210
    %v840 = vunpack.c.h.b16 %v210
    %v841 = vunpack.c.l.b16 %v211
    %v842 = vunpack.c.h.b16 %v211
    %v843 = vunpack.c.l.b16 %v212
    %v844 = vunpack.c.h.b16 %v212
    %v845 = vunpack.c.l.b16 %v213
    %v846 = vunpack.c.h.b16 %v213
    %v847 = vunpack.c.l.b16 %v214
    %v848 = vunpack.c.h.b16 %v214
    %v849 = vunpack.c.l.b16 %v215
    %v850 = vunpack.c.h.b16 %v215
    %v851 = vunpack.c.l.b16 %v216
    %v852 = vunpack.c.h.b16 %v216
    %v853 = vunpack.c.l.b16 %v217
    %v854 = vunpack.c.h.b16 %v217
    %v855 = vunpack.c.l.b16 %v218
    %v856 = vunpack.c.h.b16 %v218
    %v857 = vunpack.c.l.b16 %v219
    %v858 = vunpack.c.h.b16 %v219
    %v859 = vunpack.c.l.b16 %v220
    %v860 = vunpack.c.h.b16 %v220
    %v861 = vunpack.c.l.b16 %v221
    %v862 = vunpack.c.h.b16 %v221
    %v863 = vunpack.c.l.b16 %v222
    %v864 = vunpack.c.h.b16 %v222
    %v865 = vunpack.c.l.b16 %v223
    %v866 = vunpack.c.h.b16 %v223
    %v867 = vunpack.c.l.b16 %v224
    %v868 = vunpack.c.h.b16 %v224
    %v869 = vunpack.c.l.b16 %v225
    %v870 = vunpack.c.h.b16 %v225
    %v871 = vunpack.c.l.b16 %v226
    %v872 = vunpack.c.h.b16 %v226
    %v873 = vunpack.c.l.b16 %v227
    %v874 = vunpack.c.h.b16 %v227
    %v875 = vunpack.c.l.b16 %v228
    %v876 = vunpack.c.h.b16 %v228
    %v877 = vunpack.c.l.b16 %v229
    %v878 = vunpack.c.h.b16 %v229
    %v879 = vunpack.c.l.b16 %v230
    %v880 = vunpack.c.h.b16 %v230
    %v881 = vunpack.c.l.b16 %v231
    %v882 = vunpack.c.h.b16 %v231
    %v883 = vunpack.c.l.b16 %v232
    %v884 = vunpack.c.h.b16 %v232
    %v885 = vunpack.c.l.b16 %v233
    %v886 = vunpack.c.h.b16 %v233
    %v887 = vunpack.c.l.b16 %v234
    %v888 = vunpack.c.h.b16 %v234
    %v889 = vunpack.c.l.b16 %v235
    %v890 = vunpack.c.h.b16 %v235
    %v891 = vunpack.c.l.b16 %v236
    %v892 = vunpack.c.h.b16 %v236
    %v893 = vunpack.c.l.b16 %v237
    %v894 = vunpack.c.h.b16 %v237
    %v895 = vunpack.c.l.b16 %v238
    %v896 = vunpack.c.h.b16 %v238
    %v897 = vunpack.c.l.b16 %v239
    %v898 = vunpack.c.h.b16 %v239
    %v899 = vunpack.c.l.b16 %v240
    %v900 = vunpack.c.h.b16 %v240
    %v901 = vunpack.c.l.b16 %v241
    %v902 = vunpack.c.h.b16 %v241
    %v903 = vunpack.c.l.b16 %v242
    %v904 = vunpack.c.h.b16 %v242
    %v905 = vunpack.c.l.b16 %v243
    %v906 = vunpack.c.h.b16 %v243
    %v907 = vunpack.c.l.b16 %v244
    %v908 = vunpack.c.h.b16 %v244
    %v909 = vunpack.c.l.b16 %v245
    %v910 = vunpack.c.h.b16 %v245
    %v911 = vunpack.c.l.b16 %v246
    %v912 = vunpack.c.h.b16 %v246
    %v913 = vunpack.c.l.b16 %v247
    %v914 = vunpack.c.h.b16 %v247
    %v915 = vunpack.c.l.b16 %v248
    %v916 = vunpack.c.h.b16 %v248
    %v917 = vunpack.c.l.b16 %v249
    %v918 = vunpack.c.h.b16 %v249
    %v919 = vunpack.c.l.b16 %v250
    %v920 = vunpack.c.h.b16 %v250
    %v921 = vunpack.c.l.b16 %v251
    %v922 = vunpack.c.h.b16 %v251
    %v923 = vunpack.c.l.b16 %v252
    %v924 = vunpack.c.h.b16 %v252
    %v925 = vunpack.c.l.b16 %v253
    %v926 = vunpack.c.h.b16 %v253
    %v927 = vunpack.c.l.b16 %v254
    %v928 = vunpack.c.h.b16 %v254
    %v929 = vunpack.c.l.b16 %v255
    %v930 = vunpack.c.h.b16 %v255
    %v931 = vunpack.c.l.b16 %v256
    %v932 = vunpack.c.h.b16 %v256
    %v933 = vunpack.c.l.b16 %v257
    %v934 = vunpack.c.h.b16 %v257
    %v935 = vunpack.c.l.b16 %v258
    %v936 = vunpack.c.h.b16 %v258
    %v937 = vunpack.c.l.b16 %v259
    %v938 = vunpack.c.h.b16 %v259
    %v939 = vunpack.c.l.b16 %v260
    %v940 = vunpack.c.h.b16 %v260
    %v941 = vunpack.c.l.b16 %v261
    %v942 = vunpack.c.h.b16 %v261
    %v943 = vunpack.c.l.b16 %v262
    %v944 = vunpack.c.h.b16 %v262
    %v945 = vunpack.c.l.b16 %v263
    %v946 = vunpack.c.h.b16 %v263
    %v947 = vunpack.c.l.b16 %v264
    %v948 = vunpack.c.h.b16 %v264
    %v949 = vunpack.c.l.b16 %v265
    %v950 = vunpack.c.h.b16 %v265
    %v951 = vunpack.c.l.b16 %v266
    %v952 = vunpack.c.h.b16 %v266
    %v953 = vunpack.c.l.b16 %v267
    %v954 = vunpack.c.h.b16 %v267
    %v955 = vunpack.c.l.b16 %v268
    %v956 = vunpack.c.h.b16 %v268
    %v957 = vunpack.c.l.b16 %v269
    %v958 = vunpack.c.h.b16 %v269
    %v959 = vunpack.c.l.b16 %v270
    %v960 = vunpack.c.h.b16 %v270
    %v961 = vunpack.c.l.b16 %v271
    %v962 = vunpack.c.h.b16 %v271
    %v963 = vunpack.c.l.b16 %v272
    %v964 = vunpack.c.h.b16 %v272
    %v965 = vunpack.c.l.b16 %v273
    %v966 = vunpack.c.h.b16 %v273
    %v967 = vunpack.c.l.b16 %v274
    %v968 = vunpack.c.h.b16 %v274
    %v969 = vunpack.c.l.b16 %v275
    %v970 = vunpack.c.h.b16 %v275
    %v971 = vunpack.c.l.b16 %v276
    %v972 = vunpack.c.h.b16 %v276
    %v973 = vunpack.c.l.b16 %v277
    %v974 = vunpack.c.h.b16 %v277
    %v975 = vunpack.c.l.b16 %v278
    %v976 = vunpack.c.h.b16 %v278
    %v977 = vunpack.c.l.b16 %v279
    %v978 = vunpack.c.h.b16 %v279
    %v979 = vunpack.c.l.b16 %v280
    %v980 = vunpack.c.h.b16 %v280
    %v981 = vunpack.c.l.b16 %v281
    %v982 = vunpack.c.h.b16 %v281
    %v983 = vunpack.c.l.b16 %v282
    %v984 = vunpack.c.h.b16 %v282
    %v985 = vunpack.c.l.b16 %v283
    %v986 = vunpack.c.h.b16 %v283
    %v987 = vunpack.c.l.b16 %v284
    %v988 = vunpack.c.h.b16 %v284
    %v989 = vunpack.c.l.b16 %v285
    %v990 = vunpack.c.h.b16 %v285
    %v991 = vunpack.c.l.b16 %v286
    %v992 = vunpack.c.h.b16 %v286
    %v993 = vunpack.c.l.b16 %v287
    %v994 = vunpack.c.h.b16 %v287
    %v995 = vunpack.c.l.b16 %v288
    %v996 = vunpack.c.h.b16 %v288
    %v997 = vunpack.c.l.b16 %v289
    %v998 = vunpack.c.h.b16 %v289
    %v999 = vunpack.c.l.b16 %v290
    %v1000 = vunpack.c.h.b16 %v290
    %v1001 = vunpack.c.l.b16 %v291
    %v1002 = vunpack.c.h.b16 %v291
    %v1003 = vunpack.c.l.b16 %v292
    %v1004 = vunpack.c.h.b16 %v292
    %v1005 = vunpack.c.l.b16 %v293
    %v1006 = vunpack.c.h.b16 %v293
    %v1007 = vunpack.c.l.b16 %v294
    %v1008 = vunpack.c.h.b16 %v294
    %v1009 = vunpack.c.l.b16 %v295
    %v1010 = vunpack.c.h.b16 %v295
    %v1011 = vunpack.c.l.b16 %v296
    %v1012 = vunpack.c.h.b16 %v296
    %v1013 = vunpack.c.l.b16 %v297
    %v1014 = vunpack.c.h.b16 %v297
    %v1015 = vunpack.c.l.b16 %v298
    %v1016 = vunpack.c.h.b16 %v298
    %v1017 = vunpack.c.l.b16 %v299
    %v1018 = vunpack.c.h.b16 %v299
    %v1019 = vunpack.c.l.b16 %v300
    %v1020 = vunpack.c.h.b16 %v300
    %v1021 = vunpack.c.l.b16 %v301
    %v1022 = vunpack.c.h.b16 %v301
    %v1023 = vunpack.c.l.b16 %v302
    %v1024 = vunpack.c.h.b16 %v302
    %v1025 = vunpack.c.l.b16 %v303
    %v1026 = vunpack.c.h.b16 %v303
    %v1027 = vunpack.c.l.b16 %v304
    %v1028 = vunpack.c.h.b16 %v304
    %v1029 = vunpack.c.l.b16 %v305
    %v1030 = vunpack.c.h.b16 %v305
    %v1031 = vunpack.c.l.b16 %v306
    %v1032 = vunpack.c.h.b16 %v306
    %v1033 = vunpack.c.l.b16 %v307
    %v1034 = vunpack.c.h.b16 %v307
    %v1035 = vunpack.c.l.b16 %v308
    %v1036 = vunpack.c.h.b16 %v308
    %v1037 = vunpack.c.l.b16 %v309
    %v1038 = vunpack.c.h.b16 %v309
    %v1039 = vunpack.c.l.b16 %v310
    %v1040 = vunpack.c.h.b16 %v310
    %v1041 = vunpack.c.l.b16 %v311
    %v1042 = vunpack.c.h.b16 %v311
    %v1043 = vunpack.c.l.b16 %v312
    %v1044 = vunpack.c.h.b16 %v312
    %v1045 = vunpack.c.l.b16 %v313
    %v1046 = vunpack.c.h.b16 %v313
    %v1047 = vunpack.c.l.b16 %v314
    %v1048 = vunpack.c.h.b16 %v314
    %v1049 = vunpack.c.l.b16 %v315
    %v1050 = vunpack.c.h.b16 %v315
    %v1051 = vunpack.c.l.b16 %v316
    %v1052 = vunpack.c.h.b16 %v316
    %v1053 = vunpack.c.l.b16 %v317
    %v1054 = vunpack.c.h.b16 %v317
    %v1055 = vunpack.c.l.b16 %v318
    %v1056 = vunpack.c.h.b16 %v318
    %v1057 = vunpack.c.l.b16 %v319
    %v1058 = vunpack.c.h.b16 %v319
    %v1059 = vunpack.c.l.b16 %v320
    %v1060 = vunpack.c.h.b16 %v320
    %v1061 = vunpack.c.l.b16 %v321
    %v1062 = vunpack.c.h.b16 %v321
    %v1063 = vunpack.c.l.b16 %v322
    %v1064 = vunpack.c.h.b16 %v322
    %v1065 = vunpack.c.l.b16 %v323
    %v1066 = vunpack.c.h.b16 %v323
    %v1067 = vunpack.c.l.b16 %v324
    %v1068 = vunpack.c.h.b16 %v324
    %v1069 = vunpack.c.l.b16 %v325
    %v1070 = vunpack.c.h.b16 %v325
    %v1071 = vunpack.c.l.b16 %v326
    %v1072 = vunpack.c.h.b16 %v326
    %v1073 = vunpack.c.l.b16 %v327
    %v1074 = vunpack.c.h.b16 %v327
    %v1075 = vunpack.c.l.b16 %v328
    %v1076 = vunpack.c.h.b16 %v328
    %v1077 = vunpack.c.l.b16 %v329
    %v1078 = vunpack.c.h.b16 %v329
    %v1079 = vunpack.c.l.b16 %v330
    %v1080 = vunpack.c.h.b16 %v330
    %v1081 = vunpack.c.l.b16 %v331
    %v1082 = vunpack.c.h.b16 %v331
    %v1083 = vunpack.c.l.b16 %v332
    %v1084 = vunpack.c.h.b16 %v332
    %v1085 = vunpack.c.l.b16 %v333
    %v1086 = vunpack.c.h.b16 %v333
    %v1087 = vunpack.c.l.b16 %v334
    %v1088 = vunpack.c.h.b16 %v334
    %v1089 = vunpack.c.l.b16 %v335
    %v1090 = vunpack.c.h.b16 %v335
    %v1091 = vunpack.c.l.b16 %v336
    %v1092 = vunpack.c.h.b16 %v336
    %v1093 = vunpack.c.l.b16 %v337
    %v1094 = vunpack.c.h.b16 %v337
    %v1095 = vunpack.c.l.b16 %v338
    %v1096 = vunpack.c.h.b16 %v338
    %v1097 = vunpack.c.l.b16 %v339
    %v1098 = vunpack.c.h.b16 %v339
    %v1099 = vunpack.c.l.b16 %v340
    %v1100 = vunpack.c.h.b16 %v340
    %v1101 = vunpack.c.l.b16 %v341
    %v1102 = vunpack.c.h.b16 %v341
    %v1103 = vunpack.c.l.b16 %v342
    %v1104 = vunpack.c.h.b16 %v342
    %v1105 = vunpack.c.l.b16 %v343
    %v1106 = vunpack.c.h.b16 %v343
    %v1107 = vunpack.c.l.b16 %v344
    %v1108 = vunpack.c.h.b16 %v344
    %v1109 = vunpack.c.l.b16 %v345
    %v1110 = vunpack.c.h.b16 %v345
    %v1111 = vunpack.c.l.b16 %v346
    %v1112 = vunpack.c.h.b16 %v346
    %v1113 = vunpack.c.l.b16 %v347
    %v1114 = vunpack.c.h.b16 %v347
    %v1115 = vunpack.c.l.b16 %v348
    %v1116 = vunpack.c.h.b16 %v348
    %v1117 = vunpack.c.l.b16 %v349
    %v1118 = vunpack.c.h.b16 %v349
    %v1119 = vunpack.c.l.b16 %v350
    %v1120 = vunpack.c.h.b16 %v350
    %v1121 = vunpack.c.l.b16 %v351
    %v1122 = vunpack.c.h.b16 %v351
    %v1123 = vunpack.c.l.b16 %v352
    %v1124 = vunpack.c.h.b16 %v352
    %v1125 = vpack.c.b16 %v629, %v625
    %v1126 = vpack.c.b16 %v630, %v626
    %v1127 = vpack.c.b16 %v631, %v627
    %v1128 = vpack.c.b16 %v632, %v628
    %v1129 = vpack.c.b16 %v637, %v633
    %v1130 = vpack.c.b16 %v638, %v634
    %v1131 = vpack.c.b16 %v639, %v635
    %v1132 = vpack.c.b16 %v640, %v636
    %v1133 = vpack.c.b16 %v645, %v641
    %v1134 = vpack.c.b16 %v646, %v642
    %v1135 = vpack.c.b16 %v647, %v643
    %v1136 = vpack.c.b16 %v648, %v644
    %v1137 = vpack.c.b16 %v653, %v649
    %v1138 = vpack.c.b16 %v654, %v650
    %v1139 = vpack.c.b16 %v655, %v651
    %v1140 = vpack.c.b16 %v656, %v652
    %v1141 = vpack.c.b16 %v661, %v657
    %v1142 = vpack.c.b16 %v662, %v658
    %v1143 = vpack.c.b16 %v663, %v659
    %v1144 = vpack.c.b16 %v664, %v660
    %v1145 = vpack.c.b16 %v669, %v665
    %v1146 = vpack.c.b16 %v670, %v666
    %v1147 = vpack.c.b16 %v671, %v667
    %v1148 = vpack.c.b16 %v672, %v668
    %v1149 = vpack.c.b16 %v677, %v673
    %v1150 = vpack.c.b16 %v678, %v674
    %v1151 = vpack.c.b16 %v679, %v675
    %v1152 = vpack.c.b16 %v680, %v676
    %v1153 = vpack.c.b16 %v685, %v681
    %v1154 = vpack.c.b16 %v686, %v682
    %v1155 = vpack.c.b16 %v687, %v683
    %v1156 = vpack.c.b16 %v688, %v684
    %v1157 = vpack.c.b16 %v693, %v689
    %v1158 = vpack.c.b16 %v694, %v690
    %v1159 = vpack.c.b16 %v695, %v691
    %v1160 = vpack.c.b16 %v696, %v692
    %v1161 = vpack.c.b16 %v701, %v697
    %v1162 = vpack.c.b16 %v702, %v698
    %v1163 = vpack.c.b16 %v703, %v699
    %v1164 = vpack.c.b16 %v704, %v700
    %v1165 = vpack.c.b16 %v709, %v705
    %v1166 = vpack.c.b16 %v710, %v706
    %v1167 = vpack.c.b16 %v711, %v707
    %v1168 = vpack.c.b16 %v712, %v708
    %v1169 = vpack.c.b16 %v717, %v713
    %v1170 = vpack.c.b16 %v718, %v714
    %v1171 = vpack.c.b16 %v719, %v715
    %v1172 = vpack.c.b16 %v720, %v716
    %v1173 = vpack.c.b16 %v725, %v721
    %v1174 = vpack.c.b16 %v726, %v722
    %v1175 = vpack.c.b16 %v727, %v723
    %v1176 = vpack.c.b16 %v728, %v724
    %v1177 = vpack.c.b16 %v733, %v729
    %v1178 = vpack.c.b16 %v734, %v730
    %v1179 = vpack.c.b16 %v735, %v731
    %v1180 = vpack.c.b16 %v736, %v732
    %v1181 = vpack.c.b16 %v741, %v737
    %v1182 = vpack.c.b16 %v742, %v738
    %v1183 = vpack.c.b16 %v743, %v739
    %v1184 = vpack.c.b16 %v744, %v740
    %v1185 = vpack.c.b16 %v749, %v745
    %v1186 = vpack.c.b16 %v750, %v746
    %v1187 = vpack.c.b16 %v751, %v747
    %v1188 = vpack.c.b16 %v752, %v748
    %v1189 = vpack.c.b16 %v757, %v753
    %v1190 = vpack.c.b16 %v758, %v754
    %v1191 = vpack.c.b16 %v759, %v755
    %v1192 = vpack.c.b16 %v760, %v756
    %v1193 = vpack.c.b16 %v765, %v761
    %v1194 = vpack.c.b16 %v766, %v762
    %v1195 = vpack.c.b16 %v767, %v763
    %v1196 = vpack.c.b16 %v768, %v764
    %v1197 = vpack.c.b16 %v773, %v769
    %v1198 = vpack.c.b16 %v774, %v770
    %v1199 = vpack.c.b16 %v775, %v771
    %v1200 = vpack.c.b16 %v776, %v772
    %v1201 = vpack.c.b16 %v781, %v777
    %v1202 = vpack.c.b16 %v782, %v778
    %v1203 = vpack.c.b16 %v783, %v779
    %v1204 = vpack.c.b16 %v784, %v780
    %v1205 = vpack.c.b16 %v789, %v785
    %v1206 = vpack.c.b16 %v790, %v786
    %v1207 = vpack.c.b16 %v791, %v787
    %v1208 = vpack.c.b16 %v792, %v788
    %v1209 = vpack.c.b16 %v797, %v793
    %v1210 = vpack.c.b16 %v798, %v794
    %v1211 = vpack.c.b16 %v799, %v795
    %v1212 = vpack.c.b16 %v800, %v796
    %v1213 = vpack.c.b16 %v805, %v801
    %v1214 = vpack.c.b16 %v806, %v802
    %v1215 = vpack.c.b16 %v807, %v803
    %v1216 = vpack.c.b16 %v808, %v804
    %v1217 = vpack.c.b16 %v813, %v809
    %v1218 = vpack.c.b16 %v814, %v810
    %v1219 = vpack.c.b16 %v815, %v811
    %v1220 = vpack.c.b16 %v816, %v812
    %v1221 = vpack.c.b16 %v821, %v817
    %v1222 = vpack.c.b16 %v822, %v818
    %v1223 = vpack.c.b16 %v823, %v819
    %v1224 = vpack.c.b16 %v824, %v820
    %v1225 = vpack.c.b16 %v829, %v825
    %v1226 = vpack.c.b16 %v830, %v826
    %v1227 = vpack.c.b16 %v831, %v827
    %v1228 = vpack.c.b16 %v832, %v828
    %v1229 = vpack.c.b16 %v837, %v833
    %v1230 = vpack.c.b16 %v838, %v834
    %v1231 = vpack.c.b16 %v839, %v835
    %v1232 = vpack.c.b16 %v840, %v836
    %v1233 = vpack.c.b16 %v845, %v841
    %v1234 = vpack.c.b16 %v846, %v842
    %v1235 = vpack.c.b16 %v847, %v843
    %v1236 = vpack.c.b16 %v848, %v844
    %v1237 = vpack.c.b16 %v853, %v849
    %v1238 = vpack.c.b16 %v854, %v850
    %v1239 = vpack.c.b16 %v855, %v851
    %v1240 = vpack.c.b16 %v856, %v852
    %v1241 = vpack.c.b16 %v861, %v857
    %v1242 = vpack.c.b16 %v862, %v858
    %v1243 = vpack.c.b16 %v863, %v859
    %v1244 = vpack.c.b16 %v864, %v860
    %v1245 = vpack.c.b16 %v869, %v865
    %v1246 = vpack.c.b16 %v870, %v866
    %v1247 = vpack.c.b16 %v871, %v867
    %v1248 = vpack.c.b16 %v872, %v868
    %v1249 = vpack.c.b16 %v877, %v873
    %v1250 = vpack.c.b16 %v878, %v874
    %v1251 = vpack.c.b16 %v879, %v875
    %v1252 = vpack.c.b16 %v880, %v876
    %v1253 = vpack.c.b16 %v885, %v881
    %v1254 = vpack.c.b16 %v886, %v882
    %v1255 = vpack.c.b16 %v887, %v883
    %v1256 = vpack.c.b16 %v888, %v884
    %v1257 = vpack.c.b16 %v893, %v889
    %v1258 = vpack.c.b16 %v894, %v890
    %v1259 = vpack.c.b16 %v895, %v891
    %v1260 = vpack.c.b16 %v896, %v892
    %v1261 = vpack.c.b16 %v901, %v897
    %v1262 = vpack.c.b16 %v902, %v898
    %v1263 = vpack.c.b16 %v903, %v899
    %v1264 = vpack.c.b16 %v904, %v900
    %v1265 = vpack.c.b16 %v909, %v905
    %v1266 = vpack.c.b16 %v910, %v906
    %v1267 = vpack.c.b16 %v911, %v907
    %v1268 = vpack.c.b16 %v912, %v908
    %v1269 = vpack.c.b16 %v917, %v913
    %v1270 = vpack.c.b16 %v918, %v914
    %v1271 = vpack.c.b16 %v919, %v915
    %v1272 = vpack.c.b16 %v920, %v916
    %v1273 = vpack.c.b16 %v925, %v921
    %v1274 = vpack.c.b16 %v926, %v922
    %v1275 = vpack.c.b16 %v927, %v923
    %v1276 = vpack.c.b16 %v928, %v924
    %v1277 = vpack.c.b16 %v933, %v929
    %v1278 = vpack.c.b16 %v934, %v930
    %v1279 = vpack.c.b16 %v935, %v931
    %v1280 = vpack.c.b16 %v936, %v932
    %v1281 = vpack.c.b16 %v941, %v937
    %v1282 = vpack.c.b16 %v942, %v938
    %v1283 = vpack.c.b16 %v943, %v939
    %v1284 = vpack.c.b16 %v944, %v940
    %v1285 = vpack.c.b16 %v949, %v945
    %v1286 = vpack.c.b16 %v950, %v946
    %v1287 = vpack.c.b16 %v951, %v947
    %v1288 = vpack.c.b16 %v952, %v948
    %v1289 = vpack.c.b16 %v957, %v953
    %v1290 = vpack.c.b16 %v958, %v954
    %v1291 = vpack.c.b16 %v959, %v955
    %v1292 = vpack.c.b16 %v960, %v956
    %v1293 = vpack.c.b16 %v965, %v961
    %v1294 = vpack.c.b16 %v966, %v962
    %v1295 = vpack.c.b16 %v967, %v963
    %v1296 = vpack.c.b16 %v968, %v964
    %v1297 = vpack.c.b16 %v973, %v969
    %v1298 = vpack.c.b16 %v974, %v970
    %v1299 = vpack.c.b16 %v975, %v971
    %v1300 = vpack.c.b16 %v976, %v972
    %v1301 = vpack.c.b16 %v981, %v977
    %v1302 = vpack.c.b16 %v982, %v978
    %v1303 = vpack.c.b16 %v983, %v979
    %v1304 = vpack.c.b16 %v984, %v980
    %v1305 = vpack.c.b16 %v989, %v985
    %v1306 = vpack.c.b16 %v990, %v986
    %v1307 = vpack.c.b16 %v991, %v987
    %v1308 = vpack.c.b16 %v992, %v988
    %v1309 = vpack.c.b16 %v997, %v993
    %v1310 = vpack.c.b16 %v998, %v994
    %v1311 = vpack.c.b16 %v999, %v995
    %v1312 = vpack.c.b16 %v1000, %v996
    %v1313 = vpack.c.b16 %v1005, %v1001
    %v1314 = vpack.c.b16 %v1006, %v1002
    %v1315 = vpack.c.b16 %v1007, %v1003
    %v1316 = vpack.c.b16 %v1008, %v1004
    %v1317 = vpack.c.b16 %v1013, %v1009
    %v1318 = vpack.c.b16 %v1014, %v1010
    %v1319 = vpack.c.b16 %v1015, %v1011
    %v1320 = vpack.c.b16 %v1016, %v1012
    %v1321 = vpack.c.b16 %v1021, %v1017
    %v1322 = vpack.c.b16 %v1022, %v1018
    %v1323 = vpack.c.b16 %v1023, %v1019
    %v1324 = vpack.c.b16 %v1024, %v1020
    %v1325 = vpack.c.b16 %v1029, %v1025
    %v1326 = vpack.c.b16 %v1030, %v1026
    %v1327 = vpack.c.b16 %v1031, %v1027
    %v1328 = vpack.c.b16 %v1032, %v1028
    %v1329 = vpack.c.b16 %v1037, %v1033
    %v1330 = vpack.c.b16 %v1038, %v1034
    %v1331 = vpack.c.b16 %v1039, %v1035
    %v1332 = vpack.c.b16 %v1040, %v1036
    %v1333 = vpack.c.b16 %v1045, %v1041
    %v1334 = vpack.c.b16 %v1046, %v1042
    %v1335 = vpack.c.b16 %v1047, %v1043
    %v1336 = vpack.c.b16 %v1048, %v1044
    %v1337 = vpack.c.b16 %v1053, %v1049
    %v1338 = vpack.c.b16 %v1054, %v1050
    %v1339 = vpack.c.b16 %v1055, %v1051
    %v1340 = vpack.c.b16 %v1056, %v1052
    %v1341 = vpack.c.b16 %v1061, %v1057
    %v1342 = vpack.c.b16 %v1062, %v1058
    %v1343 = vpack.c.b16 %v1063, %v1059
    %v1344 = vpack.c.b16 %v1064, %v1060
    %v1345 = vpack.c.b16 %v1069, %v1065
    %v1346 = vpack.c.b16 %v1070, %v1066
    %v1347 = vpack.c.b16 %v1071, %v1067
    %v1348 = vpack.c.b16 %v1072, %v1068
    %v1349 = vpack.c.b16 %v1077, %v1073
    %v1350 = vpack.c.b16 %v1078, %v1074
    %v1351 = vpack.c.b16 %v1079, %v1075
    %v1352 = vpack.c.b16 %v1080, %v1076
    %v1353 = vpack.c.b16 %v1085, %v1081
    %v1354 = vpack.c.b16 %v1086, %v1082
    %v1355 = vpack.c.b16 %v1087, %v1083
    %v1356 = vpack.c.b16 %v1088, %v1084
    %v1357 = vpack.c.b16 %v1093, %v1089
    %v1358 = vpack.c.b16 %v1094, %v1090
    %v1359 = vpack.c.b16 %v1095, %v1091
    %v1360 = vpack.c.b16 %v1096, %v1092
    %v1361 = vpack.c.b16 %v1101, %v1097
    %v1362 = vpack.c.b16 %v1102, %v1098
    %v1363 = vpack.c.b16 %v1103, %v1099
    %v1364 = vpack.c.b16 %v1104, %v1100
    %v1365 = vpack.c.b16 %v1109, %v1105
    %v1366 = vpack.c.b16 %v1110, %v1106
    %v1367 = vpack.c.b16 %v1111, %v1107
    %v1368 = vpack.c.b16 %v1112, %v1108
    %v1369 = vpack.c.b16 %v1117, %v1113
    %v1370 = vpack.c.b16 %v1118, %v1114
    %v1371 = vpack.c.b16 %v1119, %v1115
    %v1372 = vpack.c.b16 %v1120, %v1116
    %v1373 = vpack.c.b16 %v1121, %v1121
    %v1374 = vpack.c.b16 %v1122, %v1122
    %v1375 = vpack.c.b16 %v1123, %v1123
    %v1376 = vpack.c.b16 %v1124, %v1124
    %vm1625 = vcmask 850944
    %v1627 = vsel %vm1625, %v102, 0
    %vm1629 = vcmask 1043456
    %v1631 = vsel %vm1629, %v1373, 0
    %v1634 = vsel %vm1629, %v1374, 0
    %v1637 = vsel %vm1629, %v1375, 0
    %v1640 = vsel %vm1629, %v1376, 0
    %1642 = vmatprep.subr.bf16.mxu0 %v1126
    %1643 = vmatpush1.bf16.msra.mxu0 %v1125
    %1644 = vmatprep.subr.bf16.mxu0 %v1130
    %1645 = vmatpush1.bf16.msra.mxu0 %v1129
    %1646 = vmatprep.subr.bf16.mxu0 %v1134
    %1647 = vmatpush1.bf16.msra.mxu0 %v1133
    %1648 = vmatprep.subr.bf16.mxu0 %v1138
    %1649 = vmatpush1.bf16.msra.mxu0 %v1137
    %1650 = vmatprep.subr.bf16.mxu0 %v1142
    %1651 = vmatpush1.bf16.msra.mxu0 %v1141
    %1652 = vmatprep.subr.bf16.mxu0 %v1146
    %1653 = vmatpush1.bf16.msra.mxu0 %v1145
    %1654 = vmatprep.subr.bf16.mxu0 %v1150
    %1655 = vmatpush1.bf16.msra.mxu0 %v1149
    %1656 = vmatprep.subr.bf16.mxu0 %v1154
    %1657 = vmatpush1.bf16.msra.mxu0 %v1153
    %1658 = vmatprep.subr.bf16.mxu0 %v1158
    %1659 = vmatpush1.bf16.msra.mxu0 %v1157
    %1660 = vmatprep.subr.bf16.mxu0 %v1162
    %1661 = vmatpush1.bf16.msra.mxu0 %v1161
    %1662 = vmatprep.subr.bf16.mxu0 %v1166
    %1663 = vmatpush1.bf16.msra.mxu0 %v1165
    %1664 = vmatprep.subr.bf16.mxu0 %v1170
    %1665 = vmatpush1.bf16.msra.mxu0 %v1169
    %1666 = vmatprep.subr.bf16.mxu0 %v1174
    %1667 = vmatpush1.bf16.msra.mxu0 %v1173
    %1668 = vmatprep.subr.bf16.mxu0 %v1178
    %1669 = vmatpush1.bf16.msra.mxu0 %v1177
    %1670 = vmatprep.subr.bf16.mxu0 %v1182
    %1671 = vmatpush1.bf16.msra.mxu0 %v1181
    %1672 = vmatprep.subr.bf16.mxu0 %v1186
    %1673 = vmatpush1.bf16.msra.mxu0 %v1185
    %1674 = vmatprep.mubr.bf16.mxu0 %v96
    %1675 = vmatmul.mubr.bf16.gmra.mrb[0].mxu0 %v95
    %v1676 = vpop.f32.mrb[0].mxu0
    %v1677 = vadd.f32 %v358, %v1676
    %v1678 = vpop.f32.mrb[0].mxu0
    %v1679 = vadd.f32 %v362, %v1678
    %v1680 = vpop.f32.mrb[0].mxu0
    %v1681 = vpop.f32.mrb[0].mxu0
    %1682 = vdwg.mxu0
    %1683 = vmatprep.subr.bf16.mxu0 %v1190
    %1684 = vmatpush1.bf16.msra.mxu0 %v1189
    %1685 = vmatprep.subr.bf16.mxu0 %v1194
    %1686 = vmatpush1.bf16.msra.mxu0 %v1193
    %1687 = vmatprep.subr.bf16.mxu0 %v1198
    %1688 = vmatpush1.bf16.msra.mxu0 %v1197
    %1689 = vmatprep.subr.bf16.mxu0 %v1202
    %1690 = vmatpush1.bf16.msra.mxu0 %v1201
    %1691 = vmatprep.subr.bf16.mxu0 %v1206
    %1692 = vmatpush1.bf16.msra.mxu0 %v1205
    %1693 = vmatprep.subr.bf16.mxu0 %v1210
    %1694 = vmatpush1.bf16.msra.mxu0 %v1209
    %1695 = vmatprep.subr.bf16.mxu0 %v1214
    %1696 = vmatpush1.bf16.msra.mxu0 %v1213
    %1697 = vmatprep.subr.bf16.mxu0 %v1218
    %1698 = vmatpush1.bf16.msra.mxu0 %v1217
    %1699 = vmatprep.subr.bf16.mxu0 %v1222
    %1700 = vmatpush1.bf16.msra.mxu0 %v1221
    %1701 = vmatprep.subr.bf16.mxu0 %v1226
    %1702 = vmatpush1.bf16.msra.mxu0 %v1225
    %1703 = vmatprep.subr.bf16.mxu0 %v1230
    %1704 = vmatpush1.bf16.msra.mxu0 %v1229
    %1705 = vmatprep.subr.bf16.mxu0 %v1234
    %1706 = vmatpush1.bf16.msra.mxu0 %v1233
    %1707 = vmatprep.subr.bf16.mxu0 %v1238
    %1708 = vmatpush1.bf16.msra.mxu0 %v1237
    %1709 = vmatprep.subr.bf16.mxu0 %v1242
    %1710 = vmatpush1.bf16.msra.mxu0 %v1241
    %1711 = vmatprep.subr.bf16.mxu0 %v1246
    %1712 = vmatpush1.bf16.msra.mxu0 %v1245
    %1713 = vmatprep.subr.bf16.mxu0 %v1250
    %1714 = vmatpush1.bf16.msra.mxu0 %v1249
    %1715 = vmatprep.mubr.bf16.mxu0 %v98
    %1716 = vmatmul.mubr.bf16.gmra.mrb[0].mxu0 %v97
    %v1717 = vpop.f32.mrb[0].mxu0
    %v1718 = vadd.f32 %v1677, %v1717
    %v1719 = vpop.f32.mrb[0].mxu0
    %v1720 = vadd.f32 %v1679, %v1719
    %v1721 = vpop.f32.mrb[0].mxu0
    %v1722 = vpop.f32.mrb[0].mxu0
    %1723 = vdwg.mxu0
    %1724 = vmatprep.subr.bf16.mxu0 %v1254
    %1725 = vmatpush1.bf16.msra.mxu0 %v1253
    %1726 = vmatprep.subr.bf16.mxu0 %v1258
    %1727 = vmatpush1.bf16.msra.mxu0 %v1257
    %1728 = vmatprep.subr.bf16.mxu0 %v1262
    %1729 = vmatpush1.bf16.msra.mxu0 %v1261
    %1730 = vmatprep.subr.bf16.mxu0 %v1266
    %1731 = vmatpush1.bf16.msra.mxu0 %v1265
    %1732 = vmatprep.subr.bf16.mxu0 %v1270
    %1733 = vmatpush1.bf16.msra.mxu0 %v1269
    %1734 = vmatprep.subr.bf16.mxu0 %v1274
    %1735 = vmatpush1.bf16.msra.mxu0 %v1273
    %1736 = vmatprep.subr.bf16.mxu0 %v1278
    %1737 = vmatpush1.bf16.msra.mxu0 %v1277
    %1738 = vmatprep.subr.bf16.mxu0 %v1282
    %1739 = vmatpush1.bf16.msra.mxu0 %v1281
    %1740 = vmatprep.subr.bf16.mxu0 %v1286
    %1741 = vmatpush1.bf16.msra.mxu0 %v1285
    %1742 = vmatprep.subr.bf16.mxu0 %v1290
    %1743 = vmatpush1.bf16.msra.mxu0 %v1289
    %1744 = vmatprep.subr.bf16.mxu0 %v1294
    %1745 = vmatpush1.bf16.msra.mxu0 %v1293
    %1746 = vmatprep.subr.bf16.mxu0 %v1298
    %1747 = vmatpush1.bf16.msra.mxu0 %v1297
    %1748 = vmatprep.subr.bf16.mxu0 %v1302
    %1749 = vmatpush1.bf16.msra.mxu0 %v1301
    %1750 = vmatprep.subr.bf16.mxu0 %v1306
    %1751 = vmatpush1.bf16.msra.mxu0 %v1305
    %1752 = vmatprep.subr.bf16.mxu0 %v1310
    %1753 = vmatpush1.bf16.msra.mxu0 %v1309
    %1754 = vmatprep.subr.bf16.mxu0 %v1314
    %1755 = vmatpush1.bf16.msra.mxu0 %v1313
    %1756 = vmatprep.mubr.bf16.mxu0 %v100
    %1757 = vmatmul.mubr.bf16.gmra.mrb[0].mxu0 %v99
    %v1758 = vpop.f32.mrb[0].mxu0
    %v1759 = vadd.f32 %v1718, %v1758
    %v1760 = vpop.f32.mrb[0].mxu0
    %v1761 = vadd.f32 %v1720, %v1760
    %v1762 = vpop.f32.mrb[0].mxu0
    %v1763 = vpop.f32.mrb[0].mxu0
    %1764 = vdwg.mxu0
    %1765 = vmatprep.subr.bf16.mxu0 %v1318
    %1766 = vmatpush1.bf16.msra.mxu0 %v1317
    %1767 = vmatprep.subr.bf16.mxu0 %v1322
    %1768 = vmatpush1.bf16.msra.mxu0 %v1321
    %1769 = vmatprep.subr.bf16.mxu0 %v1326
    %1770 = vmatpush1.bf16.msra.mxu0 %v1325
    %1771 = vmatprep.subr.bf16.mxu0 %v1330
    %1772 = vmatpush1.bf16.msra.mxu0 %v1329
    %1773 = vmatprep.subr.bf16.mxu0 %v1334
    %1774 = vmatpush1.bf16.msra.mxu0 %v1333
    %1775 = vmatprep.subr.bf16.mxu0 %v1338
    %1776 = vmatpush1.bf16.msra.mxu0 %v1337
    %1777 = vmatprep.subr.bf16.mxu0 %v1342
    %1778 = vmatpush1.bf16.msra.mxu0 %v1341
    %1779 = vmatprep.subr.bf16.mxu0 %v1346
    %1780 = vmatpush1.bf16.msra.mxu0 %v1345
    %1781 = vmatprep.subr.bf16.mxu0 %v1350
    %1782 = vmatpush1.bf16.msra.mxu0 %v1349
    %1783 = vmatprep.subr.bf16.mxu0 %v1354
    %1784 = vmatpush1.bf16.msra.mxu0 %v1353
    %1785 = vmatprep.subr.bf16.mxu0 %v1358
    %1786 = vmatpush1.bf16.msra.mxu0 %v1357
    %1787 = vmatprep.subr.bf16.mxu0 %v1362
    %1788 = vmatpush1.bf16.msra.mxu0 %v1361
    %1789 = vmatprep.subr.bf16.mxu0 %v1366
    %1790 = vmatpush1.bf16.msra.mxu0 %v1365
    %1791 = vmatprep.subr.bf16.mxu0 %v1370
    %1792 = vmatpush1.bf16.msra.mxu0 %v1369
    %1793 = vmatprep.subr.bf16.mxu0 %v1634
    %1794 = vmatpush1.bf16.msra.mxu0 %v1631
    %1795 = vmatprep.subr.bf16.mxu0 0
    %1796 = vmatpush1.bf16.msra.mxu0 0
    %1797 = vmatprep.mubr.bf16.mxu0 %v1627
    %1798 = vmatmul.mubr.bf16.gmra.mrb[0].mxu0 %v101
    %v1799 = vpop.f32.mrb[0].mxu0
    %v1800 = vadd.f32 %v1759, %v1799
    %v1801 = vpop.f32.mrb[0].mxu0
    %v1802 = vadd.f32 %v1761, %v1801
    %v1803 = vpop.f32.mrb[0].mxu0
    %v1804 = vpop.f32.mrb[0].mxu0
    %1805 = vdwg.mxu0
    %1806 = vmatprep.subr.bf16.mxu0 %v1128
    %1807 = vmatpush1.bf16.msra.mxu0 %v1127
    %1808 = vmatprep.subr.bf16.mxu0 %v1132
    %1809 = vmatpush1.bf16.msra.mxu0 %v1131
    %1810 = vmatprep.subr.bf16.mxu0 %v1136
    %1811 = vmatpush1.bf16.msra.mxu0 %v1135
    %1812 = vmatprep.subr.bf16.mxu0 %v1140
    %1813 = vmatpush1.bf16.msra.mxu0 %v1139
    %1814 = vmatprep.subr.bf16.mxu0 %v1144
    %1815 = vmatpush1.bf16.msra.mxu0 %v1143
    %1816 = vmatprep.subr.bf16.mxu0 %v1148
    %1817 = vmatpush1.bf16.msra.mxu0 %v1147
    %1818 = vmatprep.subr.bf16.mxu0 %v1152
    %1819 = vmatpush1.bf16.msra.mxu0 %v1151
    %1820 = vmatprep.subr.bf16.mxu0 %v1156
    %1821 = vmatpush1.bf16.msra.mxu0 %v1155
    %1822 = vmatprep.subr.bf16.mxu0 %v1160
    %1823 = vmatpush1.bf16.msra.mxu0 %v1159
    %1824 = vmatprep.subr.bf16.mxu0 %v1164
    %1825 = vmatpush1.bf16.msra.mxu0 %v1163
    %1826 = vmatprep.subr.bf16.mxu0 %v1168
    %1827 = vmatpush1.bf16.msra.mxu0 %v1167
    %1828 = vmatprep.subr.bf16.mxu0 %v1172
    %1829 = vmatpush1.bf16.msra.mxu0 %v1171
    %1830 = vmatprep.subr.bf16.mxu0 %v1176
    %1831 = vmatpush1.bf16.msra.mxu0 %v1175
    %1832 = vmatprep.subr.bf16.mxu0 %v1180
    %1833 = vmatpush1.bf16.msra.mxu0 %v1179
    %1834 = vmatprep.subr.bf16.mxu0 %v1184
    %1835 = vmatpush1.bf16.msra.mxu0 %v1183
    %1836 = vmatprep.subr.bf16.mxu0 %v1188
    %1837 = vmatpush1.bf16.msra.mxu0 %v1187
    %1838 = vmatprep.mubr.bf16.mxu0 %v96
    %1839 = vmatmul.mubr.bf16.gmra.mrb[0].mxu0 %v95
    %v1840 = vpop.f32.mrb[0].mxu0
    %v1841 = vadd.f32 %v366, %v1840
    %v1842 = vpop.f32.mrb[0].mxu0
    %v1843 = vadd.f32 %v370, %v1842
    %v1844 = vpop.f32.mrb[0].mxu0
    %v1845 = vpop.f32.mrb[0].mxu0
    %1846 = vdwg.mxu0
    %1847 = vmatprep.subr.bf16.mxu0 %v1192
    %1848 = vmatpush1.bf16.msra.mxu0 %v1191
    %1849 = vmatprep.subr.bf16.mxu0 %v1196
    %1850 = vmatpush1.bf16.msra.mxu0 %v1195
    %1851 = vmatprep.subr.bf16.mxu0 %v1200
    %1852 = vmatpush1.bf16.msra.mxu0 %v1199
    %1853 = vmatprep.subr.bf16.mxu0 %v1204
    %1854 = vmatpush1.bf16.msra.mxu0 %v1203
    %1855 = vmatprep.subr.bf16.mxu0 %v1208
    %1856 = vmatpush1.bf16.msra.mxu0 %v1207
    %1857 = vmatprep.subr.bf16.mxu0 %v1212
    %1858 = vmatpush1.bf16.msra.mxu0 %v1211
    %1859 = vmatprep.subr.bf16.mxu0 %v1216
    %1860 = vmatpush1.bf16.msra.mxu0 %v1215
    %1861 = vmatprep.subr.bf16.mxu0 %v1220
    %1862 = vmatpush1.bf16.msra.mxu0 %v1219
    %1863 = vmatprep.subr.bf16.mxu0 %v1224
    %1864 = vmatpush1.bf16.msra.mxu0 %v1223
    %1865 = vmatprep.subr.bf16.mxu0 %v1228
    %1866 = vmatpush1.bf16.msra.mxu0 %v1227
    %1867 = vmatprep.subr.bf16.mxu0 %v1232
    %1868 = vmatpush1.bf16.msra.mxu0 %v1231
    %1869 = vmatprep.subr.bf16.mxu0 %v1236
    %1870 = vmatpush1.bf16.msra.mxu0 %v1235
    %1871 = vmatprep.subr.bf16.mxu0 %v1240
    %1872 = vmatpush1.bf16.msra.mxu0 %v1239
    %1873 = vmatprep.subr.bf16.mxu0 %v1244
    %1874 = vmatpush1.bf16.msra.mxu0 %v1243
    %1875 = vmatprep.subr.bf16.mxu0 %v1248
    %1876 = vmatpush1.bf16.msra.mxu0 %v1247
    %1877 = vmatprep.subr.bf16.mxu0 %v1252
    %1878 = vmatpush1.bf16.msra.mxu0 %v1251
    %1879 = vmatprep.mubr.bf16.mxu0 %v98
    %1880 = vmatmul.mubr.bf16.gmra.mrb[0].mxu0 %v97
    %v1881 = vpop.f32.mrb[0].mxu0
    %v1882 = vadd.f32 %v1841, %v1881
    %v1883 = vpop.f32.mrb[0].mxu0
    %v1884 = vadd.f32 %v1843, %v1883
    %v1885 = vpop.f32.mrb[0].mxu0
    %v1886 = vpop.f32.mrb[0].mxu0
    %1887 = vdwg.mxu0
    %1888 = vmatprep.subr.bf16.mxu0 %v1256
    %1889 = vmatpush1.bf16.msra.mxu0 %v1255
    %1890 = vmatprep.subr.bf16.mxu0 %v1260
    %1891 = vmatpush1.bf16.msra.mxu0 %v1259
    %1892 = vmatprep.subr.bf16.mxu0 %v1264
    %1893 = vmatpush1.bf16.msra.mxu0 %v1263
    %1894 = vmatprep.subr.bf16.mxu0 %v1268
    %1895 = vmatpush1.bf16.msra.mxu0 %v1267
    %1896 = vmatprep.subr.bf16.mxu0 %v1272
    %1897 = vmatpush1.bf16.msra.mxu0 %v1271
    %1898 = vmatprep.subr.bf16.mxu0 %v1276
    %1899 = vmatpush1.bf16.msra.mxu0 %v1275
    %1900 = vmatprep.subr.bf16.mxu0 %v1280
    %1901 = vmatpush1.bf16.msra.mxu0 %v1279
    %1902 = vmatprep.subr.bf16.mxu0 %v1284
    %1903 = vmatpush1.bf16.msra.mxu0 %v1283
    %1904 = vmatprep.subr.bf16.mxu0 %v1288
    %1905 = vmatpush1.bf16.msra.mxu0 %v1287
    %1906 = vmatprep.subr.bf16.mxu0 %v1292
    %1907 = vmatpush1.bf16.msra.mxu0 %v1291
    %1908 = vmatprep.subr.bf16.mxu0 %v1296
    %1909 = vmatpush1.bf16.msra.mxu0 %v1295
    %1910 = vmatprep.subr.bf16.mxu0 %v1300
    %1911 = vmatpush1.bf16.msra.mxu0 %v1299
    %1912 = vmatprep.subr.bf16.mxu0 %v1304
    %1913 = vmatpush1.bf16.msra.mxu0 %v1303
    %1914 = vmatprep.subr.bf16.mxu0 %v1308
    %1915 = vmatpush1.bf16.msra.mxu0 %v1307
    %1916 = vmatprep.subr.bf16.mxu0 %v1312
    %1917 = vmatpush1.bf16.msra.mxu0 %v1311
    %1918 = vmatprep.subr.bf16.mxu0 %v1316
    %1919 = vmatpush1.bf16.msra.mxu0 %v1315
    %1920 = vmatprep.mubr.bf16.mxu0 %v100
    %1921 = vmatmul.mubr.bf16.gmra.mrb[0].mxu0 %v99
    %v1922 = vpop.f32.mrb[0].mxu0
    %v1923 = vadd.f32 %v1882, %v1922
    %v1924 = vpop.f32.mrb[0].mxu0
    %v1925 = vadd.f32 %v1884, %v1924
    %v1926 = vpop.f32.mrb[0].mxu0
    %v1927 = vpop.f32.mrb[0].mxu0
    %1928 = vdwg.mxu0
    %1929 = vmatprep.subr.bf16.mxu0 %v1320
    %1930 = vmatpush1.bf16.msra.mxu0 %v1319
    %1931 = vmatprep.subr.bf16.mxu0 %v1324
    %1932 = vmatpush1.bf16.msra.mxu0 %v1323
    %1933 = vmatprep.subr.bf16.mxu0 %v1328
    %1934 = vmatpush1.bf16.msra.mxu0 %v1327
    %1935 = vmatprep.subr.bf16.mxu0 %v1332
    %1936 = vmatpush1.bf16.msra.mxu0 %v1331
    %1937 = vmatprep.subr.bf16.mxu0 %v1336
    %1938 = vmatpush1.bf16.msra.mxu0 %v1335
    %1939 = vmatprep.subr.bf16.mxu0 %v1340
    %1940 = vmatpush1.bf16.msra.mxu0 %v1339
    %1941 = vmatprep.subr.bf16.mxu0 %v1344
    %1942 = vmatpush1.bf16.msra.mxu0 %v1343
    %1943 = vmatprep.subr.bf16.mxu0 %v1348
    %1944 = vmatpush1.bf16.msra.mxu0 %v1347
    %1945 = vmatprep.subr.bf16.mxu0 %v1352
    %1946 = vmatpush1.bf16.msra.mxu0 %v1351
    %1947 = vmatprep.subr.bf16.mxu0 %v1356
    %1948 = vmatpush1.bf16.msra.mxu0 %v1355
    %1949 = vmatprep.subr.bf16.mxu0 %v1360
    %1950 = vmatpush1.bf16.msra.mxu0 %v1359
    %1951 = vmatprep.subr.bf16.mxu0 %v1364
    %1952 = vmatpush1.bf16.msra.mxu0 %v1363
    %1953 = vmatprep.subr.bf16.mxu0 %v1368
    %1954 = vmatpush1.bf16.msra.mxu0 %v1367
    %1955 = vmatprep.subr.bf16.mxu0 %v1372
    %1956 = vmatpush1.bf16.msra.mxu0 %v1371
    %1957 = vmatprep.subr.bf16.mxu0 %v1640
    %1958 = vmatpush1.bf16.msra.mxu0 %v1637
    %1959 = vmatprep.subr.bf16.mxu0 0
    %1960 = vmatpush1.bf16.msra.mxu0 0
    %1961 = vmatprep.mubr.bf16.mxu0 %v1627
    %1962 = vmatmul.mubr.bf16.gmra.mrb[0].mxu0 %v101
    %v1963 = vpop.f32.mrb[0].mxu0
    %v1964 = vadd.f32 %v1923, %v1963
    %v1965 = vpop.f32.mrb[0].mxu0
    %v1966 = vadd.f32 %v1925, %v1965
    %v1967 = vpop.f32.mrb[0].mxu0
    %v1968 = vpop.f32.mrb[0].mxu0
    %1969 = vdwg.mxu0
    %v1970 = vmax.f32 %v1800, 0.0
    %v1971 = vmax.f32 %v1802, 0.0
    %v1972 = vmax.f32 %v1964, 0.0
    %v1973 = vmax.f32 %v1966, 0.0
    %v1974 = vpack.c.bf16 %v1970, %v1970
    %v1975 = vpack.c.bf16 %v1971, %v1971
    %v1976 = vpack.c.bf16 %v1972, %v1972
    %v1977 = vpack.c.bf16 %v1973, %v1973
    %v1978 = vld [vmem:[#allocation7] sm:$0xf]
    %v1979 = vld [vmem:[#allocation7 + $0x4] sm:$0xf]
    %v1980 = vld [vmem:[#allocation7 + $0x8] sm:$0xf]
    %v1981 = vld [vmem:[#allocation7 + $0xc] sm:$0xf]
    %v1982 = vld [vmem:[#allocation7 + $0x10] sm:$0xf]
    %v1983 = vld [vmem:[#allocation7 + $0x14] sm:$0xf]
    %v1984 = vld [vmem:[#allocation7 + $0x18] sm:$0xf]
    %v1985 = vld [vmem:[#allocation7 + $0x1c] sm:$0xf]
    %v1986 = vld [vmem:[#allocation7 + $0x20] sm:$0xf]
    %v1987 = vld [vmem:[#allocation7 + $0x24] sm:$0xf]
    %v1988 = vld [vmem:[#allocation7 + $0x28] sm:$0xf]
    %v1989 = vld [vmem:[#allocation7 + $0x2c] sm:$0xf]
    %v1990 = vld [vmem:[#allocation7 + $0x30] sm:$0xf]
    %v1991 = vld [vmem:[#allocation7 + $0x34] sm:$0xf]
    %v1992 = vld [vmem:[#allocation7 + $0x38] sm:$0xf]
    %v1993 = vld [vmem:[#allocation7 + $0x3c] sm:$0xf]
    %v1994 = vld [vmem:[#allocation7 + $0x40] sm:$0xf]
    %v1995 = vld [vmem:[#allocation7 + $0x44] sm:$0xf]
    %v1996 = vld [vmem:[#allocation7 + $0x48] sm:$0xf]
    %v1997 = vld [vmem:[#allocation7 + $0x4c] sm:$0xf]
    %v1998 = vld [vmem:[#allocation7 + $0x50] sm:$0xf]
    %v1999 = vld [vmem:[#allocation7 + $0x54] sm:$0xf]
    %v2000 = vld [vmem:[#allocation7 + $0x58] sm:$0xf]
    %v2001 = vld [vmem:[#allocation7 + $0x5c] sm:$0xf]
    %v2002 = vld [vmem:[#allocation7 + $0x60] sm:$0xf]
    %v2003 = vld [vmem:[#allocation7 + $0x64] sm:$0xf]
    %v2004 = vld [vmem:[#allocation7 + $0x68] sm:$0xf]
    %v2005 = vld [vmem:[#allocation7 + $0x6c] sm:$0xf]
    %v2006 = vld [vmem:[#allocation7 + $0x70] sm:$0xf]
    %v2007 = vld [vmem:[#allocation7 + $0x74] sm:$0xf]
    %v2008 = vld [vmem:[#allocation7 + $0x78] sm:$0xf]
    %v2009 = vld [vmem:[#allocation7 + $0x7c] sm:$0xf]
    %v2010 = vld [vmem:[#allocation7 + $0x80] sm:$0xf]
    %v2011 = vld [vmem:[#allocation7 + $0x84] sm:$0xf]
    %v2012 = vld [vmem:[#allocation7 + $0x88] sm:$0xf]
    %v2013 = vld [vmem:[#allocation7 + $0x8c] sm:$0xf]
    %v2014 = vld [vmem:[#allocation7 + $0x90] sm:$0xf]
    %v2015 = vld [vmem:[#allocation7 + $0x94] sm:$0xf]
    %v2016 = vld [vmem:[#allocation7 + $0x98] sm:$0xf]
    %v2017 = vld [vmem:[#allocation7 + $0x9c] sm:$0xf]
    %v2018 = vld [vmem:[#allocation7 + $0xa0] sm:$0xf]
    %v2019 = vld [vmem:[#allocation7 + $0xa4] sm:$0xf]
    %v2020 = vld [vmem:[#allocation7 + $0xa8] sm:$0xf]
    %v2021 = vld [vmem:[#allocation7 + $0xac] sm:$0xf]
    %v2022 = vld [vmem:[#allocation7 + $0xb0] sm:$0xf]
    %v2023 = vld [vmem:[#allocation7 + $0xb4] sm:$0xf]
    %v2024 = vld [vmem:[#allocation7 + $0xb8] sm:$0xf]
    %v2025 = vld [vmem:[#allocation7 + $0xbc] sm:$0xf]
    %v2026 = vld [vmem:[#allocation7 + $0xc0] sm:$0xf]
    %v2027 = vld [vmem:[#allocation7 + $0xc4] sm:$0xf]
    %v2028 = vld [vmem:[#allocation7 + $0xc8] sm:$0xf]
    %v2029 = vld [vmem:[#allocation7 + $0xcc] sm:$0xf]
    %v2030 = vld [vmem:[#allocation7 + $0xd0] sm:$0xf]
    %v2031 = vld [vmem:[#allocation7 + $0xd4] sm:$0xf]
    %v2032 = vld [vmem:[#allocation7 + $0xd8] sm:$0xf]
    %v2033 = vld [vmem:[#allocation7 + $0xdc] sm:$0xf]
    %v2034 = vld [vmem:[#allocation7 + $0xe0] sm:$0xf]
    %v2035 = vld [vmem:[#allocation7 + $0xe4] sm:$0xf]
    %v2036 = vld [vmem:[#allocation7 + $0xe8] sm:$0xf]
    %v2037 = vld [vmem:[#allocation7 + $0xec] sm:$0xf]
    %v2038 = vld [vmem:[#allocation7 + $0xf0] sm:$0xf]
    %v2039 = vld [vmem:[#allocation7 + $0xf4] sm:$0xf]
    %v2040 = vld [vmem:[#allocation7 + $0xf8] sm:$0xf]
    %v2041 = vld [vmem:[#allocation7 + $0xfc] sm:$0xf]
    %v2042 = vld [vmem:[%s4] sm:$0x1]
    %v2044 = vlaneseq
    %v2045 = vshrl.u32 %v2044, 7
    %v2046 = vsub.s32 0, %v2045
    %v2047 = vrot.slane %v2042, %v2046
    %v2113 = vunpack.c.l.b16 %v1978
    %v2114 = vunpack.c.l.b16 %v1979
    %v2115 = vunpack.c.l.b16 %v1980
    %v2116 = vunpack.c.l.b16 %v1981
    %v2117 = vunpack.c.l.b16 %v1982
    %v2118 = vunpack.c.l.b16 %v1983
    %v2119 = vunpack.c.l.b16 %v1984
    %v2120 = vunpack.c.l.b16 %v1985
    %v2121 = vunpack.c.l.b16 %v1986
    %v2122 = vunpack.c.l.b16 %v1987
    %v2123 = vunpack.c.l.b16 %v1988
    %v2124 = vunpack.c.l.b16 %v1989
    %v2125 = vunpack.c.l.b16 %v1990
    %v2126 = vunpack.c.l.b16 %v1991
    %v2127 = vunpack.c.l.b16 %v1992
    %v2128 = vunpack.c.l.b16 %v1993
    %v2129 = vunpack.c.l.b16 %v1994
    %v2130 = vunpack.c.l.b16 %v1995
    %v2131 = vunpack.c.l.b16 %v1996
    %v2132 = vunpack.c.l.b16 %v1997
    %v2133 = vunpack.c.l.b16 %v1998
    %v2134 = vunpack.c.l.b16 %v1999
    %v2135 = vunpack.c.l.b16 %v2000
    %v2136 = vunpack.c.l.b16 %v2001
    %v2137 = vunpack.c.l.b16 %v2002
    %v2138 = vunpack.c.l.b16 %v2003
    %v2139 = vunpack.c.l.b16 %v2004
    %v2140 = vunpack.c.l.b16 %v2005
    %v2141 = vunpack.c.l.b16 %v2006
    %v2142 = vunpack.c.l.b16 %v2007
    %v2143 = vunpack.c.l.b16 %v2008
    %v2144 = vunpack.c.l.b16 %v2009
    %v2145 = vunpack.c.l.b16 %v2010
    %v2146 = vunpack.c.l.b16 %v2011
    %v2147 = vunpack.c.l.b16 %v2012
    %v2148 = vunpack.c.l.b16 %v2013
    %v2149 = vunpack.c.l.b16 %v2014
    %v2150 = vunpack.c.l.b16 %v2015
    %v2151 = vunpack.c.l.b16 %v2016
    %v2152 = vunpack.c.l.b16 %v2017
    %v2153 = vunpack.c.l.b16 %v2018
    %v2154 = vunpack.c.l.b16 %v2019
    %v2155 = vunpack.c.l.b16 %v2020
    %v2156 = vunpack.c.l.b16 %v2021
    %v2157 = vunpack.c.l.b16 %v2022
    %v2158 = vunpack.c.l.b16 %v2023
    %v2159 = vunpack.c.l.b16 %v2024
    %v2160 = vunpack.c.l.b16 %v2025
    %v2161 = vunpack.c.l.b16 %v2026
    %v2162 = vunpack.c.l.b16 %v2027
    %v2163 = vunpack.c.l.b16 %v2028
    %v2164 = vunpack.c.l.b16 %v2029
    %v2165 = vunpack.c.l.b16 %v2030
    %v2166 = vunpack.c.l.b16 %v2031
    %v2167 = vunpack.c.l.b16 %v2032
    %v2168 = vunpack.c.l.b16 %v2033
    %v2169 = vunpack.c.l.b16 %v2034
    %v2170 = vunpack.c.l.b16 %v2035
    %v2171 = vunpack.c.l.b16 %v2036
    %v2172 = vunpack.c.l.b16 %v2037
    %v2173 = vunpack.c.l.b16 %v2038
    %v2174 = vunpack.c.l.b16 %v2039
    %v2175 = vunpack.c.l.b16 %v2040
    %v2176 = vunpack.c.l.b16 %v2041
    %v2177 = vpack.c.b16 %v2114, %v2113
    %v2178 = vpack.c.b16 %v2116, %v2115
    %v2179 = vpack.c.b16 %v2118, %v2117
    %v2180 = vpack.c.b16 %v2120, %v2119
    %v2181 = vpack.c.b16 %v2122, %v2121
    %v2182 = vpack.c.b16 %v2124, %v2123
    %v2183 = vpack.c.b16 %v2126, %v2125
    %v2184 = vpack.c.b16 %v2128, %v2127
    %v2185 = vpack.c.b16 %v2130, %v2129
    %v2186 = vpack.c.b16 %v2132, %v2131
    %v2187 = vpack.c.b16 %v2134, %v2133
    %v2188 = vpack.c.b16 %v2136, %v2135
    %v2189 = vpack.c.b16 %v2138, %v2137
    %v2190 = vpack.c.b16 %v2140, %v2139
    %v2191 = vpack.c.b16 %v2142, %v2141
    %v2192 = vpack.c.b16 %v2144, %v2143
    %v2193 = vpack.c.b16 %v2146, %v2145
    %v2194 = vpack.c.b16 %v2148, %v2147
    %v2195 = vpack.c.b16 %v2150, %v2149
    %v2196 = vpack.c.b16 %v2152, %v2151
    %v2197 = vpack.c.b16 %v2154, %v2153
    %v2198 = vpack.c.b16 %v2156, %v2155
    %v2199 = vpack.c.b16 %v2158, %v2157
    %v2200 = vpack.c.b16 %v2160, %v2159
    %v2201 = vpack.c.b16 %v2162, %v2161
    %v2202 = vpack.c.b16 %v2164, %v2163
    %v2203 = vpack.c.b16 %v2166, %v2165
    %v2204 = vpack.c.b16 %v2168, %v2167
    %v2205 = vpack.c.b16 %v2170, %v2169
    %v2206 = vpack.c.b16 %v2172, %v2171
    %v2207 = vpack.c.b16 %v2174, %v2173
    %v2208 = vpack.c.b16 %v2176, %v2175
    %2241 = vmatprep.subr.bf16.mxu0 0
    %2242 = vmatpush1.bf16.msra.mxu0 %v2177
    %2243 = vmatprep.subr.bf16.mxu0 0
    %2244 = vmatpush1.bf16.msra.mxu0 %v2178
    %2245 = vmatprep.subr.bf16.mxu0 0
    %2246 = vmatpush1.bf16.msra.mxu0 %v2179
    %2247 = vmatprep.subr.bf16.mxu0 0
    %2248 = vmatpush1.bf16.msra.mxu0 %v2180
    %2249 = vmatprep.subr.bf16.mxu0 0
    %2250 = vmatpush1.bf16.msra.mxu0 %v2181
    %2251 = vmatprep.subr.bf16.mxu0 0
    %2252 = vmatpush1.bf16.msra.mxu0 %v2182
    %2253 = vmatprep.subr.bf16.mxu0 0
    %2254 = vmatpush1.bf16.msra.mxu0 %v2183
    %2255 = vmatprep.subr.bf16.mxu0 0
    %2256 = vmatpush1.bf16.msra.mxu0 %v2184
    %2257 = vmatprep.subr.bf16.mxu0 0
    %2258 = vmatpush1.bf16.msra.mxu0 %v2185
    %2259 = vmatprep.subr.bf16.mxu0 0
    %2260 = vmatpush1.bf16.msra.mxu0 %v2186
    %2261 = vmatprep.subr.bf16.mxu0 0
    %2262 = vmatpush1.bf16.msra.mxu0 %v2187
    %2263 = vmatprep.subr.bf16.mxu0 0
    %2264 = vmatpush1.bf16.msra.mxu0 %v2188
    %2265 = vmatprep.subr.bf16.mxu0 0
    %2266 = vmatpush1.bf16.msra.mxu0 %v2189
    %2267 = vmatprep.subr.bf16.mxu0 0
    %2268 = vmatpush1.bf16.msra.mxu0 %v2190
    %2269 = vmatprep.subr.bf16.mxu0 0
    %2270 = vmatpush1.bf16.msra.mxu0 %v2191
    %2271 = vmatprep.subr.bf16.mxu0 0
    %2272 = vmatpush1.bf16.msra.mxu0 %v2192
    %2273 = vmatprep.mubr.bf16.mxu0 %v1975
    %2274 = vmatmul.mubr.bf16.gmra.mrb[0].mxu0 %v1974
    %v2275 = vpop.f32.mrb[0].mxu0
    %v2276 = vadd.f32 %v2047, %v2275
    %v2277 = vpop.f32.mrb[0].mxu0
    %v2278 = vpop.f32.mrb[0].mxu0
    %v2279 = vpop.f32.mrb[0].mxu0
    %2280 = vdwg.mxu0
    %2281 = vmatprep.subr.bf16.mxu0 0
    %2282 = vmatpush1.bf16.msra.mxu0 %v2193
    %2283 = vmatprep.subr.bf16.mxu0 0
    %2284 = vmatpush1.bf16.msra.mxu0 %v2194
    %2285 = vmatprep.subr.bf16.mxu0 0
    %2286 = vmatpush1.bf16.msra.mxu0 %v2195
    %2287 = vmatprep.subr.bf16.mxu0 0
    %2288 = vmatpush1.bf16.msra.mxu0 %v2196
    %2289 = vmatprep.subr.bf16.mxu0 0
    %2290 = vmatpush1.bf16.msra.mxu0 %v2197
    %2291 = vmatprep.subr.bf16.mxu0 0
    %2292 = vmatpush1.bf16.msra.mxu0 %v2198
    %2293 = vmatprep.subr.bf16.mxu0 0
    %2294 = vmatpush1.bf16.msra.mxu0 %v2199
    %2295 = vmatprep.subr.bf16.mxu0 0
    %2296 = vmatpush1.bf16.msra.mxu0 %v2200
    %2297 = vmatprep.subr.bf16.mxu0 0
    %2298 = vmatpush1.bf16.msra.mxu0 %v2201
    %2299 = vmatprep.subr.bf16.mxu0 0
    %2300 = vmatpush1.bf16.msra.mxu0 %v2202
    %2301 = vmatprep.subr.bf16.mxu0 0
    %2302 = vmatpush1.bf16.msra.mxu0 %v2203
    %2303 = vmatprep.subr.bf16.mxu0 0
    %2304 = vmatpush1.bf16.msra.mxu0 %v2204
    %2305 = vmatprep.subr.bf16.mxu0 0
    %2306 = vmatpush1.bf16.msra.mxu0 %v2205
    %2307 = vmatprep.subr.bf16.mxu0 0
    %2308 = vmatpush1.bf16.msra.mxu0 %v2206
    %2309 = vmatprep.subr.bf16.mxu0 0
    %2310 = vmatpush1.bf16.msra.mxu0 %v2207
    %2311 = vmatprep.subr.bf16.mxu0 0
    %2312 = vmatpush1.bf16.msra.mxu0 %v2208
    %2313 = vmatprep.mubr.bf16.mxu0 %v1977
    %2314 = vmatmul.mubr.bf16.gmra.mrb[0].mxu0 %v1976
    %v2315 = vpop.f32.mrb[0].mxu0
    %v2316 = vadd.f32 %v2276, %v2315
    %v2317 = vpop.f32.mrb[0].mxu0
    %v2318 = vpop.f32.mrb[0].mxu0
    %v2319 = vpop.f32.mrb[0].mxu0
    %2320 = vdwg.mxu0
    %2321 = vst [vmem:[#allocation8] sm:$0xff] %v2316
    // Predicated region
    $region34: #{_simplenet_forward_impl.1} parent=1 // pred_check
      _
    $region35: #{_simplenet_forward_impl.1} parent=1 // pred_check_branch
      %2323 = sbr.rel (0) target = $region37
    $region36: #{_simplenet_forward_impl.1} parent=1 // pred_region
      %s2325 = ssub.s32 128, 64
      %2326 = vsyncadd [#allocation4], %s2325
      %s2327 = sshll.u32 [#allocation8], 4
      %s2328 = int_to_ptr.vmem [resolvable:$true] %s2327
      %2333 = dma.vmem_to_hbm [thread:$0]  %s2328, 64, %s5, [#allocation4], 64, 64, 4
    $region37: #{_simplenet_forward_impl.1} parent=1 // pred_fallthru
      _
    // Predicated region
    $region38: #{_simplenet_forward_impl.1} parent=1 // pred_check
      _
    $region39: #{_simplenet_forward_impl.1} parent=1 // pred_check_branch
      %2335 = sbr.rel (0) target = $region41
    $region40: #{_simplenet_forward_impl.1} parent=1 // pred_region
      %2336 = dma.done [#allocation4], 128
    $region41: #{_simplenet_forward_impl.1} parent=1 // pred_fallthru
      _
    %2337 = vsyncpa [#allocation3], 1
    %2338 = vsyncpa [#allocation6], 1
    %2339 = vsyncpa [#allocation4], 1

</llo_original>
